<compile_context>
chip_gen: v7x
topology: tpu7x:2x2x1
jax: 0.10.0
libtpu: 0.0.40
codegen_flags: <defaults>
</compile_context>

<pallas_src>
import jax
import jax.numpy as jnp
from jax.experimental import pallas as pl
from jax.experimental.pallas import tpu as pltpu


def bilstm_classifier_kernel(emb_ref, wih_f_ref, whh_f_ref, b_f_ref,
                             wih_b_ref, b_b_ref,
                             w1f_ref, w1b_ref, b1_ref, w2_ref, b2_ref,
                             out_ref):
    # emb_ref: (T*Bp, E) bf16 time-major.  whh_f_ref: (Hp, 4*Hp) bf16 with every gate
    # block padded to a 128-lane tile.  out_ref: (Bp, Op) f32 lane-dense.
    Bp = out_ref.shape[0]
    T = emb_ref.shape[0] // Bp
    Hp = whh_f_ref.shape[0]

    # ---- hoisted input projection: single (T*Bp, E) x (E, 4Hp) bf16 MXU matmul,
    # f32 accumulation, bias folded in once ----
    x_all = emb_ref[...]                                       # (T*Bp, E) bf16
    xg = (jnp.dot(x_all, wih_f_ref[...], preferred_element_type=jnp.float32)
          + b_f_ref[...])                                      # (T*Bp, 4Hp) f32

    # ---- backward direction == one backward step on x[T-1] from the zero state
    # (h0 == 0 => h0 @ whh_b == 0; c0 == 0 => f-gate irrelevant).  Issued before the
    # forward recurrence so the scheduler can hide it under the first iterations. ----
    x_last = x_all[(T - 1) * Bp:T * Bp]                        # static, sublane-aligned
    gates_b = (jnp.dot(x_last, wih_b_ref[...], preferred_element_type=jnp.float32)
               + b_b_ref[...])
    i_b = jax.nn.sigmoid(gates_b[:, 0 * Hp:1 * Hp])
    g_b = jnp.tanh(gates_b[:, 2 * Hp:3 * Hp])
    o_b = jax.nn.sigmoid(gates_b[:, 3 * Hp:4 * Hp])
    h_bwd = o_b * jnp.tanh(i_b * g_b)                          # (Bp, Hp) f32

    # ---- forward recurrence: only h @ whh on the serial path.  Gate blocks live on
    # 128-lane boundaries, so every slice below is a full vreg (no XLU realign).
    # Gate math in f32; only MXU operands are bf16. ----
    whh_f = whh_f_ref[...]                                     # (Hp, 4Hp) bf16
    h = jnp.zeros((Bp, Hp), jnp.float32)
    c = jnp.zeros((Bp, Hp), jnp.float32)
    # TODO(synk): for T > ~16 switch to lax.fori_loop(unroll=2..4) reading xg from a
    # VMEM scratch ref to bound vreg live ranges; static unroll is fine at T=8.
    for t in range(T):                                         # static unroll
        gates = xg[t * Bp:(t + 1) * Bp] + jnp.dot(
            h.astype(jnp.bfloat16), whh_f, preferred_element_type=jnp.float32)
        # PyTorch gate order: i, f, g, o
        i = jax.nn.sigmoid(gates[:, 0 * Hp:1 * Hp])
        f = jax.nn.sigmoid(gates[:, 1 * Hp:2 * Hp])
        g = jnp.tanh(gates[:, 2 * Hp:3 * Hp])
        o = jax.nn.sigmoid(gates[:, 3 * Hp:4 * Hp])
        c = f * c + i * g
        h = o * jnp.tanh(c)
    h_fwd = h

    # ---- MLP head: no lane-axis concat (w1 pre-split), fc1 output padded lane-dense,
    # bf16 MXU operands, f32 accumulate, lane-dense sigmoid store ----
    hid = jnp.maximum(
        jnp.dot(h_fwd.astype(jnp.bfloat16), w1f_ref[...],
                preferred_element_type=jnp.float32)
        + jnp.dot(h_bwd.astype(jnp.bfloat16), w1b_ref[...],
                  preferred_element_type=jnp.float32)
        + b1_ref[...],
        0.0)
    logits = (jnp.dot(hid.astype(jnp.bfloat16), w2_ref[...],
                      preferred_element_type=jnp.float32) + b2_ref[...])
    out_ref[...] = jax.nn.sigmoid(logits)                      # (Bp, Op) lane-dense


def _round_up(x, m):
    return ((x + m - 1) // m) * m


def _pad_gate_cols(w, H, Hp):
    """(rows, 4H) -> (rows, 4Hp): each H-wide gate block starts on a 128-lane boundary."""
    blocks = [jnp.pad(w[:, k * H:(k + 1) * H], ((0, 0), (0, Hp - H))) for k in range(4)]
    return jnp.concatenate(blocks, axis=1)


def fake_news_classifier_forward(token_ids, params):
    """token_ids: (B, T) int32 -> probabilities (B, output_dim) f32."""
    B, T = token_ids.shape
    H = params["whh_f"].shape[0]
    O = params["w2"].shape[1]

    Bp = _round_up(B, 16)     # bf16 activations -> sublane pack of 16
    Hp = _round_up(H, 128)    # lane-dense hidden / gate blocks
    Op = _round_up(O, 128)    # lane-dense output store

    # ---- embedding gather: time-major directly, batch padding folded into the index
    # array (no XLA transpose/pad passes over the activations). ----
    ids = jnp.pad(token_ids, ((0, Bp - B), (0, 0)))            # (Bp, T), pad rows -> id 0
    emb = jnp.take(params["embedding"], ids.T, axis=0)         # (T, Bp, E)
    emb_flat = emb.reshape(T * Bp, -1).astype(jnp.bfloat16)    # contiguous reshape
    # TODO(synk): at production vocab/seq, fold the gather into the kernel via
    # PrefetchScalarGridSpec(num_scalar_prefetch=1) token ids in SMEM + row DMAs from an
    # HBM (pl.ANY) embedding table, and tile the input projection over T (v7x VMEM).

    bf16 = jnp.bfloat16
    wih_f = _pad_gate_cols(params["wih_f"], H, Hp).astype(bf16)               # (E, 4Hp)
    whh_f = _pad_gate_cols(jnp.pad(params["whh_f"], ((0, Hp - H), (0, 0))),
                           H, Hp).astype(bf16)                                # (Hp, 4Hp)
    b_f = _pad_gate_cols(params["b_f"], H, Hp)                                # (1, 4Hp) f32
    wih_b = _pad_gate_cols(params["wih_b"], H, Hp).astype(bf16)               # (E, 4Hp)
    b_b = _pad_gate_cols(params["b_b"], H, Hp)                                # (1, 4Hp) f32

    w1f = jnp.pad(params["w1"][:H], ((0, Hp - H), (0, Hp - H))).astype(bf16)  # (Hp, Hp)
    w1b = jnp.pad(params["w1"][H:], ((0, Hp - H), (0, Hp - H))).astype(bf16)  # (Hp, Hp)
    b1 = jnp.pad(params["b1"], ((0, 0), (0, Hp - H)))                         # (1, Hp) f32
    w2 = jnp.pad(params["w2"], ((0, Hp - H), (0, Op - O))).astype(bf16)       # (Hp, Op)
    b2 = jnp.pad(params["b2"], ((0, 0), (0, Op - O)))                         # (1, Op) f32

    vmem = pl.BlockSpec(memory_space=pltpu.MemorySpace.VMEM)
    args = (emb_flat, wih_f, whh_f, b_f, wih_b, b_b, w1f, w1b, b1, w2, b2)

    # TODO(synk): once B is large, add a batch-tile grid axis with
    # dimension_semantics=("parallel",) + batch-sliced BlockSpecs so v7x's second
    # TensorCore gets work; vmem_limit kept <= 48 MiB for v7x double-buffer headroom.
    out = pl.pallas_call(
        bilstm_classifier_kernel,
        out_shape=jax.ShapeDtypeStruct((Bp, Op), jnp.float32),
        in_specs=[vmem] * len(args),
        out_specs=vmem,
        compiler_params=pltpu.CompilerParams(vmem_limit_bytes=48 * 1024 * 1024),
    )(*args)
    return out[:B, :O]


def init_params(key, vocab_size, embedding_dim, hidden_dim, output_dim):
    ks = jax.random.split(key, 12)
    s = 0.1
    E, H, O = embedding_dim, hidden_dim, output_dim
    return {
        "embedding": s * jax.random.normal(ks[0], (vocab_size, E), jnp.float32),
        # LSTM forward direction (PyTorch weight_ih_l0 is (4H, E); stored transposed)
        "wih_f": s * jax.random.normal(ks[1], (E, 4 * H), jnp.float32),
        "whh_f": s * jax.random.normal(ks[2], (H, 4 * H), jnp.float32),
        "b_f":   s * jax.random.normal(ks[3], (1, 4 * H), jnp.float32),  # b_ih + b_hh
        # LSTM reverse direction (whh_b kept for reference parity; unused in kernel, h0=0)
        "wih_b": s * jax.random.normal(ks[4], (E, 4 * H), jnp.float32),
        "whh_b": s * jax.random.normal(ks[5], (H, 4 * H), jnp.float32),
        "b_b":   s * jax.random.normal(ks[6], (1, 4 * H), jnp.float32),
        # fc1: Linear(2H -> H); fc2: Linear(H -> O)  (stored transposed)
        "w1": s * jax.random.normal(ks[7], (2 * H, H), jnp.float32),
        "b1": s * jax.random.normal(ks[8], (1, H), jnp.float32),
        "w2": s * jax.random.normal(ks[9], (H, O), jnp.float32),
        "b2": s * jax.random.normal(ks[10], (1, O), jnp.float32),
    }


def reference_forward(token_ids, params):
    """Pure-JAX f32 reference of the same forward pass (for correctness check)."""
    emb = jnp.take(params["embedding"], token_ids, axis=0)
    H = params["whh_f"].shape[0]
    B, T, _ = emb.shape

    def cell(x_t, h, c, wih, whh, b):
        gates = x_t @ wih + h @ whh + b
        i = jax.nn.sigmoid(gates[:, :H])
        f = jax.nn.sigmoid(gates[:, H:2 * H])
        g = jnp.tanh(gates[:, 2 * H:3 * H])
        o = jax.nn.sigmoid(gates[:, 3 * H:])
        c = f * c + i * g
        h = o * jnp.tanh(c)
        return h, c

    h = jnp.zeros((B, H), jnp.float32)
    c = jnp.zeros((B, H), jnp.float32)
    for t in range(T):
        h, c = cell(emb[:, t], h, c, params["wih_f"], params["whh_f"], params["b_f"])
    hb, _ = cell(emb[:, T - 1], jnp.zeros((B, H)), jnp.zeros((B, H)),
                 params["wih_b"], params["whh_b"], params["b_b"])
    feat = jnp.concatenate([h, hb], axis=-1)
    hid = jnp.maximum(feat @ params["w1"] + params["b1"], 0.0)
    return jax.nn.sigmoid(hid @ params["w2"] + params["b2"])


if __name__ == "__main__":
    vocab_size, embedding_dim, hidden_dim, output_dim = 50, 16, 32, 2
    batch, seq_len = 4, 8

    key = jax.random.PRNGKey(0)
    k_params, k_tokens = jax.random.split(key)
    params = init_params(k_params, vocab_size, embedding_dim, hidden_dim, output_dim)
    token_ids = jax.random.randint(k_tokens, (batch, seq_len), 0, vocab_size,
                                   dtype=jnp.int32)

    out = fake_news_classifier_forward(token_ids, params)
    out = jax.block_until_ready(out)

    ref = jax.block_until_ready(reference_forward(token_ids, params))
    assert out.shape == (batch, output_dim)
    # bf16 MXU operands -> looser tolerance vs the f32 reference.
    assert jnp.allclose(out, ref, rtol=2e-2, atol=2e-2), \
        "Pallas kernel mismatch vs JAX reference"

    print("KERNEL_OK")
</pallas_src>

<mosaic_0001>
module attributes {stable_mosaic.version = 11 : i64} {
  func.func @bilstm_classifier_kernel(%arg0: memref<128x16xbf16, #tpu.memory_space<vmem>>, %arg1: memref<16x512xbf16, #tpu.memory_space<vmem>>, %arg2: memref<128x512xbf16, #tpu.memory_space<vmem>>, %arg3: memref<1x512xf32, #tpu.memory_space<vmem>>, %arg4: memref<16x512xbf16, #tpu.memory_space<vmem>>, %arg5: memref<1x512xf32, #tpu.memory_space<vmem>>, %arg6: memref<128x128xbf16, #tpu.memory_space<vmem>>, %arg7: memref<128x128xbf16, #tpu.memory_space<vmem>>, %arg8: memref<1x128xf32, #tpu.memory_space<vmem>>, %arg9: memref<128x128xbf16, #tpu.memory_space<vmem>>, %arg10: memref<1x128xf32, #tpu.memory_space<vmem>>, %arg11: memref<16x128xf32, #tpu.memory_space<vmem>>) attributes {dimension_semantics = [], scalar_prefetch = 0 : i64, scratch_operands = 0 : i64, tpu.core_type = #tpu.core_type<tc>} {
    %c0 = arith.constant 0 : index
    %c0_0 = arith.constant 0 : index
    %0 = vector.load %arg0[%c0, %c0_0] : memref<128x16xbf16, #tpu.memory_space<vmem>>, vector<128x16xbf16>
    %c0_1 = arith.constant 0 : index
    %c0_2 = arith.constant 0 : index
    %1 = vector.load %arg1[%c0_1, %c0_2] : memref<16x512xbf16, #tpu.memory_space<vmem>>, vector<16x512xbf16>
    %cst = arith.constant dense<0.000000e+00> : vector<128x512xf32>
    %2 = tpu.matmul %0, %1, %cst {dimension_numbers = #tpu.dot_dimension_numbers<[1], [0], [0], [1], [0, 0, 1, 1], [], []>} : vector<128x16xbf16>, vector<16x512xbf16>, vector<128x512xf32> -> vector<128x512xf32>
    %c0_3 = arith.constant 0 : index
    %c0_4 = arith.constant 0 : index
    %3 = vector.load %arg3[%c0_3, %c0_4] : memref<1x512xf32, #tpu.memory_space<vmem>>, vector<1x512xf32>
    %4 = vector.broadcast %3 : vector<1x512xf32> to vector<128x512xf32>
    %5 = arith.addf %2, %4 : vector<128x512xf32>
    %6 = vector.extract_strided_slice %0 {offsets = [112, 0], sizes = [16, 16], strides = [1, 1]} : vector<128x16xbf16> to vector<16x16xbf16>
    %c0_5 = arith.constant 0 : index
    %c0_6 = arith.constant 0 : index
    %7 = vector.load %arg4[%c0_5, %c0_6] : memref<16x512xbf16, #tpu.memory_space<vmem>>, vector<16x512xbf16>
    %cst_7 = arith.constant dense<0.000000e+00> : vector<16x512xf32>
    %8 = tpu.matmul %6, %7, %cst_7 {dimension_numbers = #tpu.dot_dimension_numbers<[1], [0], [0], [1], [0, 0, 1, 1], [], []>} : vector<16x16xbf16>, vector<16x512xbf16>, vector<16x512xf32> -> vector<16x512xf32>
    %c0_8 = arith.constant 0 : index
    %c0_9 = arith.constant 0 : index
    %9 = vector.load %arg5[%c0_8, %c0_9] : memref<1x512xf32, #tpu.memory_space<vmem>>, vector<1x512xf32>
    %10 = vector.broadcast %9 : vector<1x512xf32> to vector<16x512xf32>
    %11 = arith.addf %8, %10 : vector<16x512xf32>
    %12 = vector.extract_strided_slice %11 {offsets = [0, 0], sizes = [16, 128], strides = [1, 1]} : vector<16x512xf32> to vector<16x128xf32>
    %13 = arith.negf %12 : vector<16x128xf32>
    %14 = math.exp %13 : vector<16x128xf32>
    %cst_10 = arith.constant 1.000000e+00 : f32
    %15 = vector.broadcast %cst_10 : f32 to vector<16x128xf32>
    %16 = arith.addf %15, %14 : vector<16x128xf32>
    %17 = arith.divf %15, %16 : vector<16x128xf32>
    %18 = vector.extract_strided_slice %11 {offsets = [0, 256], sizes = [16, 128], strides = [1, 1]} : vector<16x512xf32> to vector<16x128xf32>
    %19 = math.tanh %18 : vector<16x128xf32>
    %20 = vector.extract_strided_slice %11 {offsets = [0, 384], sizes = [16, 128], strides = [1, 1]} : vector<16x512xf32> to vector<16x128xf32>
    %21 = arith.negf %20 : vector<16x128xf32>
    %22 = math.exp %21 : vector<16x128xf32>
    %cst_11 = arith.constant 1.000000e+00 : f32
    %23 = vector.broadcast %cst_11 : f32 to vector<16x128xf32>
    %24 = arith.addf %23, %22 : vector<16x128xf32>
    %25 = arith.divf %23, %24 : vector<16x128xf32>
    %26 = arith.mulf %17, %19 : vector<16x128xf32>
    %27 = math.tanh %26 : vector<16x128xf32>
    %28 = arith.mulf %25, %27 : vector<16x128xf32>
    %c0_12 = arith.constant 0 : index
    %c0_13 = arith.constant 0 : index
    %29 = vector.load %arg2[%c0_12, %c0_13] : memref<128x512xbf16, #tpu.memory_space<vmem>>, vector<128x512xbf16>
    %cst_14 = arith.constant 0.000000e+00 : f32
    %30 = vector.broadcast %cst_14 : f32 to vector<16x128xf32>
    %cst_15 = arith.constant 0.000000e+00 : f32
    %31 = vector.broadcast %cst_15 : f32 to vector<16x128xf32>
    %32 = vector.extract_strided_slice %5 {offsets = [0, 0], sizes = [16, 512], strides = [1, 1]} : vector<128x512xf32> to vector<16x512xf32>
    %33 = arith.truncf %30 : vector<16x128xf32> to vector<16x128xbf16>
    %cst_16 = arith.constant dense<0.000000e+00> : vector<16x512xf32>
    %34 = tpu.matmul %33, %29, %cst_16 {dimension_numbers = #tpu.dot_dimension_numbers<[1], [0], [0], [1], [0, 0, 1, 1], [], []>} : vector<16x128xbf16>, vector<128x512xbf16>, vector<16x512xf32> -> vector<16x512xf32>
    %35 = arith.addf %32, %34 : vector<16x512xf32>
    %36 = vector.extract_strided_slice %35 {offsets = [0, 0], sizes = [16, 128], strides = [1, 1]} : vector<16x512xf32> to vector<16x128xf32>
    %37 = arith.negf %36 : vector<16x128xf32>
    %38 = math.exp %37 : vector<16x128xf32>
    %cst_17 = arith.constant 1.000000e+00 : f32
    %39 = vector.broadcast %cst_17 : f32 to vector<16x128xf32>
    %40 = arith.addf %39, %38 : vector<16x128xf32>
    %41 = arith.divf %39, %40 : vector<16x128xf32>
    %42 = vector.extract_strided_slice %35 {offsets = [0, 128], sizes = [16, 128], strides = [1, 1]} : vector<16x512xf32> to vector<16x128xf32>
    %43 = arith.negf %42 : vector<16x128xf32>
    %44 = math.exp %43 : vector<16x128xf32>
    %cst_18 = arith.constant 1.000000e+00 : f32
    %45 = vector.broadcast %cst_18 : f32 to vector<16x128xf32>
    %46 = arith.addf %45, %44 : vector<16x128xf32>
    %47 = arith.divf %45, %46 : vector<16x128xf32>
    %48 = vector.extract_strided_slice %35 {offsets = [0, 256], sizes = [16, 128], strides = [1, 1]} : vector<16x512xf32> to vector<16x128xf32>
    %49 = math.tanh %48 : vector<16x128xf32>
    %50 = vector.extract_strided_slice %35 {offsets = [0, 384], sizes = [16, 128], strides = [1, 1]} : vector<16x512xf32> to vector<16x128xf32>
    %51 = arith.negf %50 : vector<16x128xf32>
    %52 = math.exp %51 : vector<16x128xf32>
    %cst_19 = arith.constant 1.000000e+00 : f32
    %53 = vector.broadcast %cst_19 : f32 to vector<16x128xf32>
    %54 = arith.addf %53, %52 : vector<16x128xf32>
    %55 = arith.divf %53, %54 : vector<16x128xf32>
    %56 = arith.mulf %47, %31 : vector<16x128xf32>
    %57 = arith.mulf %41, %49 : vector<16x128xf32>
    %58 = arith.addf %56, %57 : vector<16x128xf32>
    %59 = math.tanh %58 : vector<16x128xf32>
    %60 = arith.mulf %55, %59 : vector<16x128xf32>
    %61 = vector.extract_strided_slice %5 {offsets = [16, 0], sizes = [16, 512], strides = [1, 1]} : vector<128x512xf32> to vector<16x512xf32>
    %62 = arith.truncf %60 : vector<16x128xf32> to vector<16x128xbf16>
    %cst_20 = arith.constant dense<0.000000e+00> : vector<16x512xf32>
    %63 = tpu.matmul %62, %29, %cst_20 {dimension_numbers = #tpu.dot_dimension_numbers<[1], [0], [0], [1], [0, 0, 1, 1], [], []>} : vector<16x128xbf16>, vector<128x512xbf16>, vector<16x512xf32> -> vector<16x512xf32>
    %64 = arith.addf %61, %63 : vector<16x512xf32>
    %65 = vector.extract_strided_slice %64 {offsets = [0, 0], sizes = [16, 128], strides = [1, 1]} : vector<16x512xf32> to vector<16x128xf32>
    %66 = arith.negf %65 : vector<16x128xf32>
    %67 = math.exp %66 : vector<16x128xf32>
    %cst_21 = arith.constant 1.000000e+00 : f32
    %68 = vector.broadcast %cst_21 : f32 to vector<16x128xf32>
    %69 = arith.addf %68, %67 : vector<16x128xf32>
    %70 = arith.divf %68, %69 : vector<16x128xf32>
    %71 = vector.extract_strided_slice %64 {offsets = [0, 128], sizes = [16, 128], strides = [1, 1]} : vector<16x512xf32> to vector<16x128xf32>
    %72 = arith.negf %71 : vector<16x128xf32>
    %73 = math.exp %72 : vector<16x128xf32>
    %cst_22 = arith.constant 1.000000e+00 : f32
    %74 = vector.broadcast %cst_22 : f32 to vector<16x128xf32>
    %75 = arith.addf %74, %73 : vector<16x128xf32>
    %76 = arith.divf %74, %75 : vector<16x128xf32>
    %77 = vector.extract_strided_slice %64 {offsets = [0, 256], sizes = [16, 128], strides = [1, 1]} : vector<16x512xf32> to vector<16x128xf32>
    %78 = math.tanh %77 : vector<16x128xf32>
    %79 = vector.extract_strided_slice %64 {offsets = [0, 384], sizes = [16, 128], strides = [1, 1]} : vector<16x512xf32> to vector<16x128xf32>
    %80 = arith.negf %79 : vector<16x128xf32>
    %81 = math.exp %80 : vector<16x128xf32>
    %cst_23 = arith.constant 1.000000e+00 : f32
    %82 = vector.broadcast %cst_23 : f32 to vector<16x128xf32>
    %83 = arith.addf %82, %81 : vector<16x128xf32>
    %84 = arith.divf %82, %83 : vector<16x128xf32>
    %85 = arith.mulf %76, %58 : vector<16x128xf32>
    %86 = arith.mulf %70, %78 : vector<16x128xf32>
    %87 = arith.addf %85, %86 : vector<16x128xf32>
    %88 = math.tanh %87 : vector<16x128xf32>
    %89 = arith.mulf %84, %88 : vector<16x128xf32>
    %90 = vector.extract_strided_slice %5 {offsets = [32, 0], sizes = [16, 512], strides = [1, 1]} : vector<128x512xf32> to vector<16x512xf32>
    %91 = arith.truncf %89 : vector<16x128xf32> to vector<16x128xbf16>
    %cst_24 = arith.constant dense<0.000000e+00> : vector<16x512xf32>
    %92 = tpu.matmul %91, %29, %cst_24 {dimension_numbers = #tpu.dot_dimension_numbers<[1], [0], [0], [1], [0, 0, 1, 1], [], []>} : vector<16x128xbf16>, vector<128x512xbf16>, vector<16x512xf32> -> vector<16x512xf32>
    %93 = arith.addf %90, %92 : vector<16x512xf32>
    %94 = vector.extract_strided_slice %93 {offsets = [0, 0], sizes = [16, 128], strides = [1, 1]} : vector<16x512xf32> to vector<16x128xf32>
    %95 = arith.negf %94 : vector<16x128xf32>
    %96 = math.exp %95 : vector<16x128xf32>
    %cst_25 = arith.constant 1.000000e+00 : f32
    %97 = vector.broadcast %cst_25 : f32 to vector<16x128xf32>
    %98 = arith.addf %97, %96 : vector<16x128xf32>
    %99 = arith.divf %97, %98 : vector<16x128xf32>
    %100 = vector.extract_strided_slice %93 {offsets = [0, 128], sizes = [16, 128], strides = [1, 1]} : vector<16x512xf32> to vector<16x128xf32>
    %101 = arith.negf %100 : vector<16x128xf32>
    %102 = math.exp %101 : vector<16x128xf32>
    %cst_26 = arith.constant 1.000000e+00 : f32
    %103 = vector.broadcast %cst_26 : f32 to vector<16x128xf32>
    %104 = arith.addf %103, %102 : vector<16x128xf32>
    %105 = arith.divf %103, %104 : vector<16x128xf32>
    %106 = vector.extract_strided_slice %93 {offsets = [0, 256], sizes = [16, 128], strides = [1, 1]} : vector<16x512xf32> to vector<16x128xf32>
    %107 = math.tanh %106 : vector<16x128xf32>
    %108 = vector.extract_strided_slice %93 {offsets = [0, 384], sizes = [16, 128], strides = [1, 1]} : vector<16x512xf32> to vector<16x128xf32>
    %109 = arith.negf %108 : vector<16x128xf32>
    %110 = math.exp %109 : vector<16x128xf32>
    %cst_27 = arith.constant 1.000000e+00 : f32
    %111 = vector.broadcast %cst_27 : f32 to vector<16x128xf32>
    %112 = arith.addf %111, %110 : vector<16x128xf32>
    %113 = arith.divf %111, %112 : vector<16x128xf32>
    %114 = arith.mulf %105, %87 : vector<16x128xf32>
    %115 = arith.mulf %99, %107 : vector<16x128xf32>
    %116 = arith.addf %114, %115 : vector<16x128xf32>
    %117 = math.tanh %116 : vector<16x128xf32>
    %118 = arith.mulf %113, %117 : vector<16x128xf32>
    %119 = vector.extract_strided_slice %5 {offsets = [48, 0], sizes = [16, 512], strides = [1, 1]} : vector<128x512xf32> to vector<16x512xf32>
    %120 = arith.truncf %118 : vector<16x128xf32> to vector<16x128xbf16>
    %cst_28 = arith.constant dense<0.000000e+00> : vector<16x512xf32>
    %121 = tpu.matmul %120, %29, %cst_28 {dimension_numbers = #tpu.dot_dimension_numbers<[1], [0], [0], [1], [0, 0, 1, 1], [], []>} : vector<16x128xbf16>, vector<128x512xbf16>, vector<16x512xf32> -> vector<16x512xf32>
    %122 = arith.addf %119, %121 : vector<16x512xf32>
    %123 = vector.extract_strided_slice %122 {offsets = [0, 0], sizes = [16, 128], strides = [1, 1]} : vector<16x512xf32> to vector<16x128xf32>
    %124 = arith.negf %123 : vector<16x128xf32>
    %125 = math.exp %124 : vector<16x128xf32>
    %cst_29 = arith.constant 1.000000e+00 : f32
    %126 = vector.broadcast %cst_29 : f32 to vector<16x128xf32>
    %127 = arith.addf %126, %125 : vector<16x128xf32>
    %128 = arith.divf %126, %127 : vector<16x128xf32>
    %129 = vector.extract_strided_slice %122 {offsets = [0, 128], sizes = [16, 128], strides = [1, 1]} : vector<16x512xf32> to vector<16x128xf32>
    %130 = arith.negf %129 : vector<16x128xf32>
    %131 = math.exp %130 : vector<16x128xf32>
    %cst_30 = arith.constant 1.000000e+00 : f32
    %132 = vector.broadcast %cst_30 : f32 to vector<16x128xf32>
    %133 = arith.addf %132, %131 : vector<16x128xf32>
    %134 = arith.divf %132, %133 : vector<16x128xf32>
    %135 = vector.extract_strided_slice %122 {offsets = [0, 256], sizes = [16, 128], strides = [1, 1]} : vector<16x512xf32> to vector<16x128xf32>
    %136 = math.tanh %135 : vector<16x128xf32>
    %137 = vector.extract_strided_slice %122 {offsets = [0, 384], sizes = [16, 128], strides = [1, 1]} : vector<16x512xf32> to vector<16x128xf32>
    %138 = arith.negf %137 : vector<16x128xf32>
    %139 = math.exp %138 : vector<16x128xf32>
    %cst_31 = arith.constant 1.000000e+00 : f32
    %140 = vector.broadcast %cst_31 : f32 to vector<16x128xf32>
    %141 = arith.addf %140, %139 : vector<16x128xf32>
    %142 = arith.divf %140, %141 : vector<16x128xf32>
    %143 = arith.mulf %134, %116 : vector<16x128xf32>
    %144 = arith.mulf %128, %136 : vector<16x128xf32>
    %145 = arith.addf %143, %144 : vector<16x128xf32>
    %146 = math.tanh %145 : vector<16x128xf32>
    %147 = arith.mulf %142, %146 : vector<16x128xf32>
    %148 = vector.extract_strided_slice %5 {offsets = [64, 0], sizes = [16, 512], strides = [1, 1]} : vector<128x512xf32> to vector<16x512xf32>
    %149 = arith.truncf %147 : vector<16x128xf32> to vector<16x128xbf16>
    %cst_32 = arith.constant dense<0.000000e+00> : vector<16x512xf32>
    %150 = tpu.matmul %149, %29, %cst_32 {dimension_numbers = #tpu.dot_dimension_numbers<[1], [0], [0], [1], [0, 0, 1, 1], [], []>} : vector<16x128xbf16>, vector<128x512xbf16>, vector<16x512xf32> -> vector<16x512xf32>
    %151 = arith.addf %148, %150 : vector<16x512xf32>
    %152 = vector.extract_strided_slice %151 {offsets = [0, 0], sizes = [16, 128], strides = [1, 1]} : vector<16x512xf32> to vector<16x128xf32>
    %153 = arith.negf %152 : vector<16x128xf32>
    %154 = math.exp %153 : vector<16x128xf32>
    %cst_33 = arith.constant 1.000000e+00 : f32
    %155 = vector.broadcast %cst_33 : f32 to vector<16x128xf32>
    %156 = arith.addf %155, %154 : vector<16x128xf32>
    %157 = arith.divf %155, %156 : vector<16x128xf32>
    %158 = vector.extract_strided_slice %151 {offsets = [0, 128], sizes = [16, 128], strides = [1, 1]} : vector<16x512xf32> to vector<16x128xf32>
    %159 = arith.negf %158 : vector<16x128xf32>
    %160 = math.exp %159 : vector<16x128xf32>
    %cst_34 = arith.constant 1.000000e+00 : f32
    %161 = vector.broadcast %cst_34 : f32 to vector<16x128xf32>
    %162 = arith.addf %161, %160 : vector<16x128xf32>
    %163 = arith.divf %161, %162 : vector<16x128xf32>
    %164 = vector.extract_strided_slice %151 {offsets = [0, 256], sizes = [16, 128], strides = [1, 1]} : vector<16x512xf32> to vector<16x128xf32>
    %165 = math.tanh %164 : vector<16x128xf32>
    %166 = vector.extract_strided_slice %151 {offsets = [0, 384], sizes = [16, 128], strides = [1, 1]} : vector<16x512xf32> to vector<16x128xf32>
    %167 = arith.negf %166 : vector<16x128xf32>
    %168 = math.exp %167 : vector<16x128xf32>
    %cst_35 = arith.constant 1.000000e+00 : f32
    %169 = vector.broadcast %cst_35 : f32 to vector<16x128xf32>
    %170 = arith.addf %169, %168 : vector<16x128xf32>
    %171 = arith.divf %169, %170 : vector<16x128xf32>
    %172 = arith.mulf %163, %145 : vector<16x128xf32>
    %173 = arith.mulf %157, %165 : vector<16x128xf32>
    %174 = arith.addf %172, %173 : vector<16x128xf32>
    %175 = math.tanh %174 : vector<16x128xf32>
    %176 = arith.mulf %171, %175 : vector<16x128xf32>
    %177 = vector.extract_strided_slice %5 {offsets = [80, 0], sizes = [16, 512], strides = [1, 1]} : vector<128x512xf32> to vector<16x512xf32>
    %178 = arith.truncf %176 : vector<16x128xf32> to vector<16x128xbf16>
    %cst_36 = arith.constant dense<0.000000e+00> : vector<16x512xf32>
    %179 = tpu.matmul %178, %29, %cst_36 {dimension_numbers = #tpu.dot_dimension_numbers<[1], [0], [0], [1], [0, 0, 1, 1], [], []>} : vector<16x128xbf16>, vector<128x512xbf16>, vector<16x512xf32> -> vector<16x512xf32>
    %180 = arith.addf %177, %179 : vector<16x512xf32>
    %181 = vector.extract_strided_slice %180 {offsets = [0, 0], sizes = [16, 128], strides = [1, 1]} : vector<16x512xf32> to vector<16x128xf32>
    %182 = arith.negf %181 : vector<16x128xf32>
    %183 = math.exp %182 : vector<16x128xf32>
    %cst_37 = arith.constant 1.000000e+00 : f32
    %184 = vector.broadcast %cst_37 : f32 to vector<16x128xf32>
    %185 = arith.addf %184, %183 : vector<16x128xf32>
    %186 = arith.divf %184, %185 : vector<16x128xf32>
    %187 = vector.extract_strided_slice %180 {offsets = [0, 128], sizes = [16, 128], strides = [1, 1]} : vector<16x512xf32> to vector<16x128xf32>
    %188 = arith.negf %187 : vector<16x128xf32>
    %189 = math.exp %188 : vector<16x128xf32>
    %cst_38 = arith.constant 1.000000e+00 : f32
    %190 = vector.broadcast %cst_38 : f32 to vector<16x128xf32>
    %191 = arith.addf %190, %189 : vector<16x128xf32>
    %192 = arith.divf %190, %191 : vector<16x128xf32>
    %193 = vector.extract_strided_slice %180 {offsets = [0, 256], sizes = [16, 128], strides = [1, 1]} : vector<16x512xf32> to vector<16x128xf32>
    %194 = math.tanh %193 : vector<16x128xf32>
    %195 = vector.extract_strided_slice %180 {offsets = [0, 384], sizes = [16, 128], strides = [1, 1]} : vector<16x512xf32> to vector<16x128xf32>
    %196 = arith.negf %195 : vector<16x128xf32>
    %197 = math.exp %196 : vector<16x128xf32>
    %cst_39 = arith.constant 1.000000e+00 : f32
    %198 = vector.broadcast %cst_39 : f32 to vector<16x128xf32>
    %199 = arith.addf %198, %197 : vector<16x128xf32>
    %200 = arith.divf %198, %199 : vector<16x128xf32>
    %201 = arith.mulf %192, %174 : vector<16x128xf32>
    %202 = arith.mulf %186, %194 : vector<16x128xf32>
    %203 = arith.addf %201, %202 : vector<16x128xf32>
    %204 = math.tanh %203 : vector<16x128xf32>
    %205 = arith.mulf %200, %204 : vector<16x128xf32>
    %206 = vector.extract_strided_slice %5 {offsets = [96, 0], sizes = [16, 512], strides = [1, 1]} : vector<128x512xf32> to vector<16x512xf32>
    %207 = arith.truncf %205 : vector<16x128xf32> to vector<16x128xbf16>
    %cst_40 = arith.constant dense<0.000000e+00> : vector<16x512xf32>
    %208 = tpu.matmul %207, %29, %cst_40 {dimension_numbers = #tpu.dot_dimension_numbers<[1], [0], [0], [1], [0, 0, 1, 1], [], []>} : vector<16x128xbf16>, vector<128x512xbf16>, vector<16x512xf32> -> vector<16x512xf32>
    %209 = arith.addf %206, %208 : vector<16x512xf32>
    %210 = vector.extract_strided_slice %209 {offsets = [0, 0], sizes = [16, 128], strides = [1, 1]} : vector<16x512xf32> to vector<16x128xf32>
    %211 = arith.negf %210 : vector<16x128xf32>
    %212 = math.exp %211 : vector<16x128xf32>
    %cst_41 = arith.constant 1.000000e+00 : f32
    %213 = vector.broadcast %cst_41 : f32 to vector<16x128xf32>
    %214 = arith.addf %213, %212 : vector<16x128xf32>
    %215 = arith.divf %213, %214 : vector<16x128xf32>
    %216 = vector.extract_strided_slice %209 {offsets = [0, 128], sizes = [16, 128], strides = [1, 1]} : vector<16x512xf32> to vector<16x128xf32>
    %217 = arith.negf %216 : vector<16x128xf32>
    %218 = math.exp %217 : vector<16x128xf32>
    %cst_42 = arith.constant 1.000000e+00 : f32
    %219 = vector.broadcast %cst_42 : f32 to vector<16x128xf32>
    %220 = arith.addf %219, %218 : vector<16x128xf32>
    %221 = arith.divf %219, %220 : vector<16x128xf32>
    %222 = vector.extract_strided_slice %209 {offsets = [0, 256], sizes = [16, 128], strides = [1, 1]} : vector<16x512xf32> to vector<16x128xf32>
    %223 = math.tanh %222 : vector<16x128xf32>
    %224 = vector.extract_strided_slice %209 {offsets = [0, 384], sizes = [16, 128], strides = [1, 1]} : vector<16x512xf32> to vector<16x128xf32>
    %225 = arith.negf %224 : vector<16x128xf32>
    %226 = math.exp %225 : vector<16x128xf32>
    %cst_43 = arith.constant 1.000000e+00 : f32
    %227 = vector.broadcast %cst_43 : f32 to vector<16x128xf32>
    %228 = arith.addf %227, %226 : vector<16x128xf32>
    %229 = arith.divf %227, %228 : vector<16x128xf32>
    %230 = arith.mulf %221, %203 : vector<16x128xf32>
    %231 = arith.mulf %215, %223 : vector<16x128xf32>
    %232 = arith.addf %230, %231 : vector<16x128xf32>
    %233 = math.tanh %232 : vector<16x128xf32>
    %234 = arith.mulf %229, %233 : vector<16x128xf32>
    %235 = vector.extract_strided_slice %5 {offsets = [112, 0], sizes = [16, 512], strides = [1, 1]} : vector<128x512xf32> to vector<16x512xf32>
    %236 = arith.truncf %234 : vector<16x128xf32> to vector<16x128xbf16>
    %cst_44 = arith.constant dense<0.000000e+00> : vector<16x512xf32>
    %237 = tpu.matmul %236, %29, %cst_44 {dimension_numbers = #tpu.dot_dimension_numbers<[1], [0], [0], [1], [0, 0, 1, 1], [], []>} : vector<16x128xbf16>, vector<128x512xbf16>, vector<16x512xf32> -> vector<16x512xf32>
    %238 = arith.addf %235, %237 : vector<16x512xf32>
    %239 = vector.extract_strided_slice %238 {offsets = [0, 0], sizes = [16, 128], strides = [1, 1]} : vector<16x512xf32> to vector<16x128xf32>
    %240 = arith.negf %239 : vector<16x128xf32>
    %241 = math.exp %240 : vector<16x128xf32>
    %cst_45 = arith.constant 1.000000e+00 : f32
    %242 = vector.broadcast %cst_45 : f32 to vector<16x128xf32>
    %243 = arith.addf %242, %241 : vector<16x128xf32>
    %244 = arith.divf %242, %243 : vector<16x128xf32>
    %245 = vector.extract_strided_slice %238 {offsets = [0, 128], sizes = [16, 128], strides = [1, 1]} : vector<16x512xf32> to vector<16x128xf32>
    %246 = arith.negf %245 : vector<16x128xf32>
    %247 = math.exp %246 : vector<16x128xf32>
    %cst_46 = arith.constant 1.000000e+00 : f32
    %248 = vector.broadcast %cst_46 : f32 to vector<16x128xf32>
    %249 = arith.addf %248, %247 : vector<16x128xf32>
    %250 = arith.divf %248, %249 : vector<16x128xf32>
    %251 = vector.extract_strided_slice %238 {offsets = [0, 256], sizes = [16, 128], strides = [1, 1]} : vector<16x512xf32> to vector<16x128xf32>
    %252 = math.tanh %251 : vector<16x128xf32>
    %253 = vector.extract_strided_slice %238 {offsets = [0, 384], sizes = [16, 128], strides = [1, 1]} : vector<16x512xf32> to vector<16x128xf32>
    %254 = arith.negf %253 : vector<16x128xf32>
    %255 = math.exp %254 : vector<16x128xf32>
    %cst_47 = arith.constant 1.000000e+00 : f32
    %256 = vector.broadcast %cst_47 : f32 to vector<16x128xf32>
    %257 = arith.addf %256, %255 : vector<16x128xf32>
    %258 = arith.divf %256, %257 : vector<16x128xf32>
    %259 = arith.mulf %250, %232 : vector<16x128xf32>
    %260 = arith.mulf %244, %252 : vector<16x128xf32>
    %261 = arith.addf %259, %260 : vector<16x128xf32>
    %262 = math.tanh %261 : vector<16x128xf32>
    %263 = arith.mulf %258, %262 : vector<16x128xf32>
    %264 = arith.truncf %263 : vector<16x128xf32> to vector<16x128xbf16>
    %c0_48 = arith.constant 0 : index
    %c0_49 = arith.constant 0 : index
    %265 = vector.load %arg6[%c0_48, %c0_49] : memref<128x128xbf16, #tpu.memory_space<vmem>>, vector<128x128xbf16>
    %cst_50 = arith.constant dense<0.000000e+00> : vector<16x128xf32>
    %266 = tpu.matmul %264, %265, %cst_50 {dimension_numbers = #tpu.dot_dimension_numbers<[1], [0], [0], [1], [0, 0, 1, 1], [], []>} : vector<16x128xbf16>, vector<128x128xbf16>, vector<16x128xf32> -> vector<16x128xf32>
    %267 = arith.truncf %28 : vector<16x128xf32> to vector<16x128xbf16>
    %c0_51 = arith.constant 0 : index
    %c0_52 = arith.constant 0 : index
    %268 = vector.load %arg7[%c0_51, %c0_52] : memref<128x128xbf16, #tpu.memory_space<vmem>>, vector<128x128xbf16>
    %cst_53 = arith.constant dense<0.000000e+00> : vector<16x128xf32>
    %269 = tpu.matmul %267, %268, %cst_53 {dimension_numbers = #tpu.dot_dimension_numbers<[1], [0], [0], [1], [0, 0, 1, 1], [], []>} : vector<16x128xbf16>, vector<128x128xbf16>, vector<16x128xf32> -> vector<16x128xf32>
    %270 = arith.addf %266, %269 : vector<16x128xf32>
    %c0_54 = arith.constant 0 : index
    %c0_55 = arith.constant 0 : index
    %271 = vector.load %arg8[%c0_54, %c0_55] : memref<1x128xf32, #tpu.memory_space<vmem>>, vector<1x128xf32>
    %272 = vector.broadcast %271 : vector<1x128xf32> to vector<16x128xf32>
    %273 = arith.addf %270, %272 : vector<16x128xf32>
    %cst_56 = arith.constant 0.000000e+00 : f32
    %274 = vector.broadcast %cst_56 : f32 to vector<16x128xf32>
    %275 = arith.maximumf %273, %274 : vector<16x128xf32>
    %276 = arith.truncf %275 : vector<16x128xf32> to vector<16x128xbf16>
    %c0_57 = arith.constant 0 : index
    %c0_58 = arith.constant 0 : index
    %277 = vector.load %arg9[%c0_57, %c0_58] : memref<128x128xbf16, #tpu.memory_space<vmem>>, vector<128x128xbf16>
    %cst_59 = arith.constant dense<0.000000e+00> : vector<16x128xf32>
    %278 = tpu.matmul %276, %277, %cst_59 {dimension_numbers = #tpu.dot_dimension_numbers<[1], [0], [0], [1], [0, 0, 1, 1], [], []>} : vector<16x128xbf16>, vector<128x128xbf16>, vector<16x128xf32> -> vector<16x128xf32>
    %c0_60 = arith.constant 0 : index
    %c0_61 = arith.constant 0 : index
    %279 = vector.load %arg10[%c0_60, %c0_61] : memref<1x128xf32, #tpu.memory_space<vmem>>, vector<1x128xf32>
    %280 = vector.broadcast %279 : vector<1x128xf32> to vector<16x128xf32>
    %281 = arith.addf %278, %280 : vector<16x128xf32>
    %282 = arith.negf %281 : vector<16x128xf32>
    %283 = math.exp %282 : vector<16x128xf32>
    %cst_62 = arith.constant 1.000000e+00 : f32
    %284 = vector.broadcast %cst_62 : f32 to vector<16x128xf32>
    %285 = arith.addf %284, %283 : vector<16x128xf32>
    %286 = arith.divf %284, %285 : vector<16x128xf32>
    %c0_63 = arith.constant 0 : index
    %c0_64 = arith.constant 0 : index
    %287 = vector.load %arg11[%c0_63, %c0_64] : memref<16x128xf32, #tpu.memory_space<vmem>>, vector<16x128xf32>
    tpu.vector_store %arg11[%c0_63, %c0_64], %286 {strides = array<i32>} : memref<16x128xf32, #tpu.memory_space<vmem>>, vector<16x128xf32>,
    return
  }
}

</mosaic_0001>

<llo_original>
// kernel: tpu_custom_call.1
$region0: #{tpu_custom_call.1}
  #allocation0 [shape = 'u32[]', space=smem, size = 0x4, offset = 0x4, fixed_abs, tag = 'smem constant byte address 0x4 - core index']
  #allocation1 [shape = 'u32[144,128]{1,0:T(1,128)}', space=vmem, size = 0x12000, scoped, tag = 'internal scratch']
  %s0 = inlined_call_operand.vmem [shape: bf16[128,16], index: 0, kind: input, shape index: {}]
  %s1 = inlined_call_operand.hbm [shape: bf16[16,512], index: 1, kind: input, shape index: {}]
  %s2 = inlined_call_operand.hbm [shape: bf16[128,512], index: 2, kind: input, shape index: {}]
  %s3 = inlined_call_operand.vmem [shape: f32[1,512], index: 3, kind: input, shape index: {}]
  %s4 = inlined_call_operand.hbm [shape: bf16[16,512], index: 4, kind: input, shape index: {}]
  %s5 = inlined_call_operand.vmem [shape: f32[1,512], index: 5, kind: input, shape index: {}]
  %s6 = inlined_call_operand.vmem [shape: bf16[128,128], index: 6, kind: input, shape index: {}]
  %s7 = inlined_call_operand.hbm [shape: bf16[128,128], index: 7, kind: input, shape index: {}]
  %s8 = inlined_call_operand.vmem [shape: f32[1,128], index: 8, kind: input, shape index: {}]
  %s9 = inlined_call_operand.hbm [shape: bf16[128,128], index: 9, kind: input, shape index: {}]
  %s10 = inlined_call_operand.vmem [shape: f32[1,128], index: 10, kind: input, shape index: {}]
  %s11 = inlined_call_operand.hbm [shape: f32[16,128], index: 11, kind: output, shape index: {}]
  %s12 = sld [smem:[#allocation0]]
  $region74: #{tpu_custom_call.1} parent=0
    _
  %s14 = ssub.s32 1, %s12
  %s15 = scalar_select 0, %s14, %s12
  $region1: #{tpu_custom_call.1} parent=0
    #allocation2 [shape = 'u8[16384]{0}', space=vmem, size = 0x4000, scoped, tag = 'input window, operand 1, single buffered']
    #allocation3 [shape = 's32[1]{0}', space=sflag, size = 0x4, scoped, tag = 'scoped memory for tpu_custom_call.1']
    #allocation4 [shape = 's32[1]{0}', space=sflag, size = 0x4, scoped, tag = 'scoped memory for tpu_custom_call.1']
    #allocation5 [shape = 'u8[131072]{0}', space=vmem, size = 0x20000, scoped, tag = 'input window, operand 2, single buffered']
    #allocation6 [shape = 's32[1]{0}', space=sflag, size = 0x4, scoped, tag = 'scoped memory for tpu_custom_call.1']
    #allocation7 [shape = 'u8[16384]{0}', space=vmem, size = 0x4000, scoped, tag = 'input window, operand 4, single buffered']
    #allocation8 [shape = 'u8[32768]{0}', space=vmem, size = 0x8000, scoped, tag = 'input window, operand 7, single buffered']
    #allocation9 [shape = 's32[1]{0}', space=sflag, size = 0x4, scoped, tag = 'scoped memory for tpu_custom_call.1']
    #allocation10 [shape = 'u8[32768]{0}', space=vmem, size = 0x8000, scoped, tag = 'input window, operand 9, single buffered']
    #allocation11 [shape = 'u8[8192]{0}', space=vmem, size = 0x2000, scoped, tag = 'output window, operand 0, single buffered']
    %16 = vsyncpa [#allocation3], 0
    %17 = vsyncpa [#allocation6], 0
    %18 = vsyncpa [#allocation9], 0
    %19 = vsyncpa [#allocation4], 0
    // Predicated region
    $region2: #{tpu_custom_call.1} parent=1 // pred_check
      _
    $region3: #{tpu_custom_call.1} parent=1 // pred_check_branch
      %21 = sbr.rel (0) target = $region5
    $region4: #{tpu_custom_call.1} parent=1 // pred_region
      _
    $region5: #{tpu_custom_call.1} parent=1 // pred_fallthru
      _
    // Predicated region
    $region6: #{tpu_custom_call.1} parent=1 // pred_check
      _
    $region7: #{tpu_custom_call.1} parent=1 // pred_check_branch
      %23 = sbr.rel (0) target = $region9
    $region8: #{tpu_custom_call.1} parent=1 // pred_region
      %s25 = ssub.s32 512, 512
      %26 = vsyncadd [#allocation3], %s25
      %s27 = sshll.u32 [#allocation2], 4
      %s28 = int_to_ptr.vmem [resolvable:$true] %s27
      %33 = dma.hbm_to_vmem [thread:$0]  %s1, 512, %s28, [#allocation3], 256, 256, 16
    $region9: #{tpu_custom_call.1} parent=1 // pred_fallthru
      _
    // Predicated region
    $region10: #{tpu_custom_call.1} parent=1 // pred_check
      _
    $region11: #{tpu_custom_call.1} parent=1 // pred_check_branch
      %35 = sbr.rel (0) target = $region13
    $region12: #{tpu_custom_call.1} parent=1 // pred_region
      %s37 = ssub.s32 4096, 4096
      %38 = vsyncadd [#allocation6], %s37
      %s39 = sshll.u32 [#allocation5], 4
      %s40 = int_to_ptr.vmem [resolvable:$true] %s39
      %45 = dma.hbm_to_vmem [thread:$0]  %s2, 4096, %s40, [#allocation6], 256, 256, 16
    $region13: #{tpu_custom_call.1} parent=1 // pred_fallthru
      _
    // Predicated region
    $region14: #{tpu_custom_call.1} parent=1 // pred_check
      _
    $region15: #{tpu_custom_call.1} parent=1 // pred_check_branch
      %47 = sbr.rel (0) target = $region17
    $region16: #{tpu_custom_call.1} parent=1 // pred_region
      _
    $region17: #{tpu_custom_call.1} parent=1 // pred_fallthru
      _
    // Predicated region
    $region18: #{tpu_custom_call.1} parent=1 // pred_check
      _
    $region19: #{tpu_custom_call.1} parent=1 // pred_check_branch
      %49 = sbr.rel (0) target = $region21
    $region20: #{tpu_custom_call.1} parent=1 // pred_region
      %s51 = ssub.s32 512, 512
      %52 = vsyncadd [#allocation6], %s51
      %s53 = sshll.u32 [#allocation7], 4
      %s54 = int_to_ptr.vmem [resolvable:$true] %s53
      %59 = dma.hbm_to_vmem [thread:$0]  %s4, 512, %s54, [#allocation6], 256, 256, 16
    $region21: #{tpu_custom_call.1} parent=1 // pred_fallthru
      _
    // Predicated region
    $region22: #{tpu_custom_call.1} parent=1 // pred_check
      _
    $region23: #{tpu_custom_call.1} parent=1 // pred_check_branch
      %61 = sbr.rel (0) target = $region25
    $region24: #{tpu_custom_call.1} parent=1 // pred_region
      _
    $region25: #{tpu_custom_call.1} parent=1 // pred_fallthru
      _
    // Predicated region
    $region26: #{tpu_custom_call.1} parent=1 // pred_check
      _
    $region27: #{tpu_custom_call.1} parent=1 // pred_check_branch
      %63 = sbr.rel (0) target = $region29
    $region28: #{tpu_custom_call.1} parent=1 // pred_region
      _
    $region29: #{tpu_custom_call.1} parent=1 // pred_fallthru
      _
    // Predicated region
    $region30: #{tpu_custom_call.1} parent=1 // pred_check
      _
    $region31: #{tpu_custom_call.1} parent=1 // pred_check_branch
      %65 = sbr.rel (0) target = $region33
    $region32: #{tpu_custom_call.1} parent=1 // pred_region
      %s67 = ssub.s32 1024, 1024
      %68 = vsyncadd [#allocation9], %s67
      %s69 = sshll.u32 [#allocation8], 4
      %s70 = int_to_ptr.vmem [resolvable:$true] %s69
      %75 = dma.hbm_to_vmem [thread:$0]  %s7, 1024, %s70, [#allocation9], 64, 64, 4
    $region33: #{tpu_custom_call.1} parent=1 // pred_fallthru
      _
    // Predicated region
    $region34: #{tpu_custom_call.1} parent=1 // pred_check
      _
    $region35: #{tpu_custom_call.1} parent=1 // pred_check_branch
      %77 = sbr.rel (0) target = $region37
    $region36: #{tpu_custom_call.1} parent=1 // pred_region
      _
    $region37: #{tpu_custom_call.1} parent=1 // pred_fallthru
      _
    // Predicated region
    $region38: #{tpu_custom_call.1} parent=1 // pred_check
      _
    $region39: #{tpu_custom_call.1} parent=1 // pred_check_branch
      %79 = sbr.rel (0) target = $region41
    $region40: #{tpu_custom_call.1} parent=1 // pred_region
      %s81 = ssub.s32 1024, 1024
      %82 = vsyncadd [#allocation9], %s81
      %s83 = sshll.u32 [#allocation10], 4
      %s84 = int_to_ptr.vmem [resolvable:$true] %s83
      %89 = dma.hbm_to_vmem [thread:$0]  %s9, 1024, %s84, [#allocation9], 64, 64, 4
    $region41: #{tpu_custom_call.1} parent=1 // pred_fallthru
      _
    // Predicated region
    $region42: #{tpu_custom_call.1} parent=1 // pred_check
      _
    $region43: #{tpu_custom_call.1} parent=1 // pred_check_branch
      %91 = sbr.rel (0) target = $region45
    $region44: #{tpu_custom_call.1} parent=1 // pred_region
      _
    $region45: #{tpu_custom_call.1} parent=1 // pred_fallthru
      _
    // Predicated region
    $region46: #{tpu_custom_call.1} parent=1 // pred_check
      _
    $region47: #{tpu_custom_call.1} parent=1 // pred_check_branch
      %93 = sbr.rel (0) target = $region49
    $region48: #{tpu_custom_call.1} parent=1 // pred_region
      %94 = dma.done [#allocation3], 512
    $region49: #{tpu_custom_call.1} parent=1 // pred_fallthru
      _
    // Predicated region
    $region50: #{tpu_custom_call.1} parent=1 // pred_check
      _
    $region51: #{tpu_custom_call.1} parent=1 // pred_check_branch
      %96 = sbr.rel (0) target = $region53
    $region52: #{tpu_custom_call.1} parent=1 // pred_region
      %97 = dma.done [#allocation6], 4096
    $region53: #{tpu_custom_call.1} parent=1 // pred_fallthru
      _
    // Predicated region
    $region54: #{tpu_custom_call.1} parent=1 // pred_check
      _
    $region55: #{tpu_custom_call.1} parent=1 // pred_check_branch
      %99 = sbr.rel (0) target = $region57
    $region56: #{tpu_custom_call.1} parent=1 // pred_region
      %100 = dma.done [#allocation6], 512
    $region57: #{tpu_custom_call.1} parent=1 // pred_fallthru
      _
    // Predicated region
    $region58: #{tpu_custom_call.1} parent=1 // pred_check
      _
    $region59: #{tpu_custom_call.1} parent=1 // pred_check_branch
      %102 = sbr.rel (0) target = $region61
    $region60: #{tpu_custom_call.1} parent=1 // pred_region
      %103 = dma.done [#allocation9], 1024
    $region61: #{tpu_custom_call.1} parent=1 // pred_fallthru
      _
    // Predicated region
    $region62: #{tpu_custom_call.1} parent=1 // pred_check
      _
    $region63: #{tpu_custom_call.1} parent=1 // pred_check_branch
      %105 = sbr.rel (0) target = $region65
    $region64: #{tpu_custom_call.1} parent=1 // pred_region
      %106 = dma.done [#allocation9], 1024
    $region65: #{tpu_custom_call.1} parent=1 // pred_fallthru
      _
    %v108 = vld [vmem:[%s0] sm:$0xf]
    %v109 = vld [vmem:[%s0 + $0x4] sm:$0xf]
    %v110 = vld [vmem:[%s0 + $0x8] sm:$0xf]
    %v111 = vld [vmem:[%s0 + $0xc] sm:$0xf]
    %v112 = vld [vmem:[%s0 + $0x10] sm:$0xf]
    %v113 = vld [vmem:[%s0 + $0x14] sm:$0xf]
    %v114 = vld [vmem:[%s0 + $0x18] sm:$0xf]
    %v115 = vld [vmem:[%s0 + $0x1c] sm:$0xf]
    %v116 = vld [vmem:[%s0 + $0x20] sm:$0xf]
    %v117 = vld [vmem:[%s0 + $0x24] sm:$0xf]
    %v118 = vld [vmem:[%s0 + $0x28] sm:$0xf]
    %v119 = vld [vmem:[%s0 + $0x2c] sm:$0xf]
    %v120 = vld [vmem:[%s0 + $0x30] sm:$0xf]
    %v121 = vld [vmem:[%s0 + $0x34] sm:$0xf]
    %v122 = vld [vmem:[%s0 + $0x38] sm:$0xf]
    %v123 = vld [vmem:[%s0 + $0x3c] sm:$0xf]
    %v124 = vld [vmem:[#allocation2] sm:$0xff]
    %v125 = vld [vmem:[#allocation2 + $0x8] sm:$0xff]
    %v126 = vld [vmem:[#allocation2 + $0x10] sm:$0xff]
    %v127 = vld [vmem:[#allocation2 + $0x18] sm:$0xff]
    %v128 = vld [vmem:[%s3] sm:$0xf]
    %v130 = vlaneseq
    %v131 = vshrl.u32 %v130, 7
    %v132 = vsub.s32 0, %v131
    %v133 = vrot.slane %v128, %v132
    %v134 = vlaneseq
    %v135 = vshrl.u32 %v134, 7
    %v136 = vsub.s32 1, %v135
    %v137 = vrot.slane %v128, %v136
    %v138 = vlaneseq
    %v139 = vshrl.u32 %v138, 7
    %v140 = vsub.s32 2, %v139
    %v141 = vrot.slane %v128, %v140
    %v142 = vlaneseq
    %v143 = vshrl.u32 %v142, 7
    %v144 = vsub.s32 3, %v143
    %v145 = vrot.slane %v128, %v144
    %v166 = vunpack.c.l.b16 %v108
    %v167 = vunpack.c.l.b16 %v109
    %v168 = vunpack.c.l.b16 %v110
    %v169 = vunpack.c.l.b16 %v111
    %v170 = vunpack.c.l.b16 %v112
    %v171 = vunpack.c.l.b16 %v113
    %v172 = vunpack.c.l.b16 %v114
    %v173 = vunpack.c.l.b16 %v115
    %v174 = vunpack.c.l.b16 %v116
    %v175 = vunpack.c.l.b16 %v117
    %v176 = vunpack.c.l.b16 %v118
    %v177 = vunpack.c.l.b16 %v119
    %v178 = vunpack.c.l.b16 %v120
    %v179 = vunpack.c.l.b16 %v121
    %v180 = vunpack.c.l.b16 %v122
    %v181 = vunpack.c.l.b16 %v123
    %v182 = vpack.c.b16 %v167, %v166
    %v183 = vpack.c.b16 %v169, %v168
    %v184 = vpack.c.b16 %v171, %v170
    %v185 = vpack.c.b16 %v173, %v172
    %v186 = vpack.c.b16 %v175, %v174
    %v187 = vpack.c.b16 %v177, %v176
    %v188 = vpack.c.b16 %v179, %v178
    %v189 = vpack.c.b16 %v181, %v180
    %v194 = vunpack.c.l.b16 %v124
    %v195 = vunpack.c.h.b16 %v124
    %v196 = vunpack.c.l.b16 %v125
    %v197 = vunpack.c.h.b16 %v125
    %v198 = vunpack.c.l.b16 %v126
    %v199 = vunpack.c.h.b16 %v126
    %v200 = vunpack.c.l.b16 %v127
    %v201 = vunpack.c.h.b16 %v127
    %v202 = vpack.c.b16 %v198, %v194
    %v203 = vpack.c.b16 %v199, %v195
    %v204 = vpack.c.b16 %v200, %v196
    %v205 = vpack.c.b16 %v201, %v197
    %vm210 = vcmask 130048
    %v212 = vsel %vm210, %v182, 0
    %v215 = vsel %vm210, %v183, 0
    %v218 = vsel %vm210, %v184, 0
    %v221 = vsel %vm210, %v185, 0
    %v224 = vsel %vm210, %v186, 0
    %v227 = vsel %vm210, %v187, 0
    %v230 = vsel %vm210, %v188, 0
    %v233 = vsel %vm210, %v189, 0
    %235 = vmatprep.subr.bf16.mxu0 %v203
    %236 = vmatpush1.bf16.msra.mxu0 %v202
    %237 = vmatprep.subr.bf16.mxu0 0
    %238 = vmatpush1.bf16.msra.mxu0 0
    %239 = vmatprep.subr.bf16.mxu0 0
    %240 = vmatpush1.bf16.msra.mxu0 0
    %241 = vmatprep.subr.bf16.mxu0 0
    %242 = vmatpush1.bf16.msra.mxu0 0
    %243 = vmatprep.subr.bf16.mxu0 0
    %244 = vmatpush1.bf16.msra.mxu0 0
    %245 = vmatprep.subr.bf16.mxu0 0
    %246 = vmatpush1.bf16.msra.mxu0 0
    %247 = vmatprep.subr.bf16.mxu0 0
    %248 = vmatpush1.bf16.msra.mxu0 0
    %249 = vmatprep.subr.bf16.mxu0 0
    %250 = vmatpush1.bf16.msra.mxu0 0
    %251 = vmatprep.subr.bf16.mxu0 0
    %252 = vmatpush1.bf16.msra.mxu0 0
    %253 = vmatprep.subr.bf16.mxu0 0
    %254 = vmatpush1.bf16.msra.mxu0 0
    %255 = vmatprep.subr.bf16.mxu0 0
    %256 = vmatpush1.bf16.msra.mxu0 0
    %257 = vmatprep.subr.bf16.mxu0 0
    %258 = vmatpush1.bf16.msra.mxu0 0
    %259 = vmatprep.subr.bf16.mxu0 0
    %260 = vmatpush1.bf16.msra.mxu0 0
    %261 = vmatprep.subr.bf16.mxu0 0
    %262 = vmatpush1.bf16.msra.mxu0 0
    %263 = vmatprep.subr.bf16.mxu0 0
    %264 = vmatpush1.bf16.msra.mxu0 0
    %265 = vmatprep.subr.bf16.mxu0 0
    %266 = vmatpush1.bf16.msra.mxu0 0
    %267 = vmatprep.mubr.bf16.mxu0 0
    %268 = vmatmul.mubr.bf16.gmra.mrb[0].mxu0 %v212
    %v269 = vpop.f32.mrb[0].mxu0
    %v270 = vadd.f32 %v133, %v269
    %v271 = vpop.f32.mrb[0].mxu0
    %v272 = vadd.f32 %v137, %v271
    %v273 = vpop.f32.mrb[0].mxu0
    %v274 = vadd.f32 %v133, %v273
    %v275 = vpop.f32.mrb[0].mxu0
    %v276 = vadd.f32 %v137, %v275
    %277 = vmatprep.mubr.bf16.mxu0 0
    %278 = vmatmul.mubr.bf16.gmra.mrb[0].mxu0 %v215
    %v279 = vpop.f32.mrb[0].mxu0
    %v280 = vadd.f32 %v133, %v279
    %v281 = vpop.f32.mrb[0].mxu0
    %v282 = vadd.f32 %v137, %v281
    %v283 = vpop.f32.mrb[0].mxu0
    %v284 = vadd.f32 %v133, %v283
    %v285 = vpop.f32.mrb[0].mxu0
    %v286 = vadd.f32 %v137, %v285
    %287 = vmatprep.mubr.bf16.mxu0 0
    %288 = vmatmul.mubr.bf16.gmra.mrb[0].mxu0 %v218
    %v289 = vpop.f32.mrb[0].mxu0
    %v290 = vadd.f32 %v133, %v289
    %v291 = vpop.f32.mrb[0].mxu0
    %v292 = vadd.f32 %v137, %v291
    %v293 = vpop.f32.mrb[0].mxu0
    %v294 = vadd.f32 %v133, %v293
    %v295 = vpop.f32.mrb[0].mxu0
    %v296 = vadd.f32 %v137, %v295
    %297 = vmatprep.mubr.bf16.mxu0 0
    %298 = vmatmul.mubr.bf16.gmra.mrb[0].mxu0 %v221
    %v299 = vpop.f32.mrb[0].mxu0
    %v300 = vadd.f32 %v133, %v299
    %v301 = vpop.f32.mrb[0].mxu0
    %v302 = vadd.f32 %v137, %v301
    %v303 = vpop.f32.mrb[0].mxu0
    %v304 = vadd.f32 %v133, %v303
    %v305 = vpop.f32.mrb[0].mxu0
    %v306 = vadd.f32 %v137, %v305
    %307 = vmatprep.mubr.bf16.mxu0 0
    %308 = vmatmul.mubr.bf16.gmra.mrb[0].mxu0 %v224
    %v309 = vpop.f32.mrb[0].mxu0
    %v310 = vadd.f32 %v133, %v309
    %v311 = vpop.f32.mrb[0].mxu0
    %v312 = vadd.f32 %v137, %v311
    %v313 = vpop.f32.mrb[0].mxu0
    %v314 = vadd.f32 %v133, %v313
    %v315 = vpop.f32.mrb[0].mxu0
    %v316 = vadd.f32 %v137, %v315
    %317 = vmatprep.mubr.bf16.mxu0 0
    %318 = vmatmul.mubr.bf16.gmra.mrb[0].mxu0 %v227
    %v319 = vpop.f32.mrb[0].mxu0
    %v320 = vadd.f32 %v133, %v319
    %v321 = vpop.f32.mrb[0].mxu0
    %v322 = vadd.f32 %v137, %v321
    %v323 = vpop.f32.mrb[0].mxu0
    %v324 = vadd.f32 %v133, %v323
    %v325 = vpop.f32.mrb[0].mxu0
    %v326 = vadd.f32 %v137, %v325
    %327 = vmatprep.mubr.bf16.mxu0 0
    %328 = vmatmul.mubr.bf16.gmra.mrb[0].mxu0 %v230
    %v329 = vpop.f32.mrb[0].mxu0
    %v330 = vadd.f32 %v133, %v329
    %v331 = vpop.f32.mrb[0].mxu0
    %v332 = vadd.f32 %v137, %v331
    %v333 = vpop.f32.mrb[0].mxu0
    %v334 = vadd.f32 %v133, %v333
    %v335 = vpop.f32.mrb[0].mxu0
    %v336 = vadd.f32 %v137, %v335
    %337 = vmatprep.mubr.bf16.mxu0 0
    %338 = vmatmul.mubr.bf16.gmra.mrb[0].mxu0 %v233
    %v339 = vpop.f32.mrb[0].mxu0
    %v340 = vadd.f32 %v133, %v339
    %v341 = vpop.f32.mrb[0].mxu0
    %v342 = vadd.f32 %v137, %v341
    %v343 = vpop.f32.mrb[0].mxu0
    %v344 = vadd.f32 %v133, %v343
    %v345 = vpop.f32.mrb[0].mxu0
    %v346 = vadd.f32 %v137, %v345
    %347 = vdwg.mxu0
    %348 = vmatprep.subr.bf16.mxu0 %v205
    %349 = vmatpush1.bf16.msra.mxu0 %v204
    %350 = vmatprep.subr.bf16.mxu0 0
    %351 = vmatpush1.bf16.msra.mxu0 0
    %352 = vmatprep.subr.bf16.mxu0 0
    %353 = vmatpush1.bf16.msra.mxu0 0
    %354 = vmatprep.subr.bf16.mxu0 0
    %355 = vmatpush1.bf16.msra.mxu0 0
    %356 = vmatprep.subr.bf16.mxu0 0
    %357 = vmatpush1.bf16.msra.mxu0 0
    %358 = vmatprep.subr.bf16.mxu0 0
    %359 = vmatpush1.bf16.msra.mxu0 0
    %360 = vmatprep.subr.bf16.mxu0 0
    %361 = vmatpush1.bf16.msra.mxu0 0
    %362 = vmatprep.subr.bf16.mxu0 0
    %363 = vmatpush1.bf16.msra.mxu0 0
    %364 = vmatprep.subr.bf16.mxu0 0
    %365 = vmatpush1.bf16.msra.mxu0 0
    %366 = vmatprep.subr.bf16.mxu0 0
    %367 = vmatpush1.bf16.msra.mxu0 0
    %368 = vmatprep.subr.bf16.mxu0 0
    %369 = vmatpush1.bf16.msra.mxu0 0
    %370 = vmatprep.subr.bf16.mxu0 0
    %371 = vmatpush1.bf16.msra.mxu0 0
    %372 = vmatprep.subr.bf16.mxu0 0
    %373 = vmatpush1.bf16.msra.mxu0 0
    %374 = vmatprep.subr.bf16.mxu0 0
    %375 = vmatpush1.bf16.msra.mxu0 0
    %376 = vmatprep.subr.bf16.mxu0 0
    %377 = vmatpush1.bf16.msra.mxu0 0
    %378 = vmatprep.subr.bf16.mxu0 0
    %379 = vmatpush1.bf16.msra.mxu0 0
    %380 = vmatprep.mubr.bf16.mxu0 0
    %381 = vmatmul.mubr.bf16.gmra.mrb[0].mxu0 %v212
    %v382 = vpop.f32.mrb[0].mxu0
    %v383 = vadd.f32 %v141, %v382
    %v384 = vpop.f32.mrb[0].mxu0
    %v385 = vadd.f32 %v145, %v384
    %v386 = vpop.f32.mrb[0].mxu0
    %v387 = vadd.f32 %v141, %v386
    %v388 = vpop.f32.mrb[0].mxu0
    %v389 = vadd.f32 %v145, %v388
    %390 = vmatprep.mubr.bf16.mxu0 0
    %391 = vmatmul.mubr.bf16.gmra.mrb[0].mxu0 %v215
    %v392 = vpop.f32.mrb[0].mxu0
    %v393 = vadd.f32 %v141, %v392
    %v394 = vpop.f32.mrb[0].mxu0
    %v395 = vadd.f32 %v145, %v394
    %v396 = vpop.f32.mrb[0].mxu0
    %v397 = vadd.f32 %v141, %v396
    %v398 = vpop.f32.mrb[0].mxu0
    %v399 = vadd.f32 %v145, %v398
    %400 = vmatprep.mubr.bf16.mxu0 0
    %401 = vmatmul.mubr.bf16.gmra.mrb[0].mxu0 %v218
    %v402 = vpop.f32.mrb[0].mxu0
    %v403 = vadd.f32 %v141, %v402
    %v404 = vpop.f32.mrb[0].mxu0
    %v405 = vadd.f32 %v145, %v404
    %v406 = vpop.f32.mrb[0].mxu0
    %v407 = vadd.f32 %v141, %v406
    %v408 = vpop.f32.mrb[0].mxu0
    %v409 = vadd.f32 %v145, %v408
    %410 = vmatprep.mubr.bf16.mxu0 0
    %411 = vmatmul.mubr.bf16.gmra.mrb[0].mxu0 %v221
    %v412 = vpop.f32.mrb[0].mxu0
    %v413 = vadd.f32 %v141, %v412
    %v414 = vpop.f32.mrb[0].mxu0
    %v415 = vadd.f32 %v145, %v414
    %v416 = vpop.f32.mrb[0].mxu0
    %v417 = vadd.f32 %v141, %v416
    %v418 = vpop.f32.mrb[0].mxu0
    %v419 = vadd.f32 %v145, %v418
    %420 = vmatprep.mubr.bf16.mxu0 0
    %421 = vmatmul.mubr.bf16.gmra.mrb[0].mxu0 %v224
    %v422 = vpop.f32.mrb[0].mxu0
    %v423 = vadd.f32 %v141, %v422
    %v424 = vpop.f32.mrb[0].mxu0
    %v425 = vadd.f32 %v145, %v424
    %v426 = vpop.f32.mrb[0].mxu0
    %v427 = vadd.f32 %v141, %v426
    %v428 = vpop.f32.mrb[0].mxu0
    %v429 = vadd.f32 %v145, %v428
    %430 = vmatprep.mubr.bf16.mxu0 0
    %431 = vmatmul.mubr.bf16.gmra.mrb[0].mxu0 %v227
    %v432 = vpop.f32.mrb[0].mxu0
    %v433 = vadd.f32 %v141, %v432
    %v434 = vpop.f32.mrb[0].mxu0
    %v435 = vadd.f32 %v145, %v434
    %v436 = vpop.f32.mrb[0].mxu0
    %v437 = vadd.f32 %v141, %v436
    %v438 = vpop.f32.mrb[0].mxu0
    %v439 = vadd.f32 %v145, %v438
    %440 = vmatprep.mubr.bf16.mxu0 0
    %441 = vmatmul.mubr.bf16.gmra.mrb[0].mxu0 %v230
    %v442 = vpop.f32.mrb[0].mxu0
    %v443 = vadd.f32 %v141, %v442
    %v444 = vpop.f32.mrb[0].mxu0
    %v445 = vadd.f32 %v145, %v444
    %v446 = vpop.f32.mrb[0].mxu0
    %v447 = vadd.f32 %v141, %v446
    %v448 = vpop.f32.mrb[0].mxu0
    %v449 = vadd.f32 %v145, %v448
    %450 = vmatprep.mubr.bf16.mxu0 0
    %451 = vmatmul.mubr.bf16.gmra.mrb[0].mxu0 %v233
    %v452 = vpop.f32.mrb[0].mxu0
    %v453 = vadd.f32 %v141, %v452
    %v454 = vpop.f32.mrb[0].mxu0
    %v455 = vadd.f32 %v145, %v454
    %v456 = vpop.f32.mrb[0].mxu0
    %v457 = vadd.f32 %v141, %v456
    %v458 = vpop.f32.mrb[0].mxu0
    %v459 = vadd.f32 %v145, %v458
    %460 = vdwg.mxu0
    %v461 = vld [vmem:[#allocation7] sm:$0xff]
    %v462 = vld [vmem:[#allocation7 + $0x8] sm:$0xff]
    %v463 = vld [vmem:[#allocation7 + $0x10] sm:$0xff]
    %v464 = vld [vmem:[#allocation7 + $0x18] sm:$0xff]
    %v465 = vld [vmem:[%s5] sm:$0xf]
    %v467 = vlaneseq
    %v468 = vshrl.u32 %v467, 7
    %v469 = vsub.s32 0, %v468
    %v470 = vrot.slane %v465, %v469
    %v471 = vlaneseq
    %v472 = vshrl.u32 %v471, 7
    %v473 = vsub.s32 2, %v472
    %v474 = vrot.slane %v465, %v473
    %v475 = vlaneseq
    %v476 = vshrl.u32 %v475, 7
    %v477 = vsub.s32 3, %v476
    %v478 = vrot.slane %v465, %v477
    %v486 = vunpack.c.l.b16 %v461
    %v487 = vunpack.c.h.b16 %v461
    %v488 = vunpack.c.l.b16 %v462
    %v489 = vunpack.c.h.b16 %v462
    %v490 = vunpack.c.l.b16 %v463
    %v491 = vunpack.c.h.b16 %v463
    %v492 = vunpack.c.l.b16 %v464
    %v493 = vunpack.c.h.b16 %v464
    %v494 = vpack.c.b16 %v490, %v486
    %v495 = vpack.c.b16 %v491, %v487
    %v496 = vpack.c.b16 %v492, %v488
    %v497 = vpack.c.b16 %v493, %v489
    %502 = vmatprep.subr.bf16.mxu0 %v495
    %503 = vmatpush1.bf16.msra.mxu0 %v494
    %504 = vmatprep.subr.bf16.mxu0 0
    %505 = vmatpush1.bf16.msra.mxu0 0
    %506 = vmatprep.subr.bf16.mxu0 0
    %507 = vmatpush1.bf16.msra.mxu0 0
    %508 = vmatprep.subr.bf16.mxu0 0
    %509 = vmatpush1.bf16.msra.mxu0 0
    %510 = vmatprep.subr.bf16.mxu0 0
    %511 = vmatpush1.bf16.msra.mxu0 0
    %512 = vmatprep.subr.bf16.mxu0 0
    %513 = vmatpush1.bf16.msra.mxu0 0
    %514 = vmatprep.subr.bf16.mxu0 0
    %515 = vmatpush1.bf16.msra.mxu0 0
    %516 = vmatprep.subr.bf16.mxu0 0
    %517 = vmatpush1.bf16.msra.mxu0 0
    %518 = vmatprep.subr.bf16.mxu0 0
    %519 = vmatpush1.bf16.msra.mxu0 0
    %520 = vmatprep.subr.bf16.mxu0 0
    %521 = vmatpush1.bf16.msra.mxu0 0
    %522 = vmatprep.subr.bf16.mxu0 0
    %523 = vmatpush1.bf16.msra.mxu0 0
    %524 = vmatprep.subr.bf16.mxu0 0
    %525 = vmatpush1.bf16.msra.mxu0 0
    %526 = vmatprep.subr.bf16.mxu0 0
    %527 = vmatpush1.bf16.msra.mxu0 0
    %528 = vmatprep.subr.bf16.mxu0 0
    %529 = vmatpush1.bf16.msra.mxu0 0
    %530 = vmatprep.subr.bf16.mxu0 0
    %531 = vmatpush1.bf16.msra.mxu0 0
    %532 = vmatprep.subr.bf16.mxu0 0
    %533 = vmatpush1.bf16.msra.mxu0 0
    %534 = vmatprep.mubr.bf16.mxu0 0
    %535 = vmatmul.mubr.bf16.gmra.mrb[0].mxu0 %v233
    %v536 = vpop.f32.mrb[0].mxu0
    %v537 = vadd.f32 %v470, %v536
    %v538 = vpop.f32.mrb[0].mxu0
    %v539 = vpop.f32.mrb[0].mxu0
    %v540 = vadd.f32 %v470, %v539
    %v541 = vpop.f32.mrb[0].mxu0
    %542 = vdwg.mxu0
    %543 = vmatprep.subr.bf16.mxu0 %v497
    %544 = vmatpush1.bf16.msra.mxu0 %v496
    %545 = vmatprep.subr.bf16.mxu0 0
    %546 = vmatpush1.bf16.msra.mxu0 0
    %547 = vmatprep.subr.bf16.mxu0 0
    %548 = vmatpush1.bf16.msra.mxu0 0
    %549 = vmatprep.subr.bf16.mxu0 0
    %550 = vmatpush1.bf16.msra.mxu0 0
    %551 = vmatprep.subr.bf16.mxu0 0
    %552 = vmatpush1.bf16.msra.mxu0 0
    %553 = vmatprep.subr.bf16.mxu0 0
    %554 = vmatpush1.bf16.msra.mxu0 0
    %555 = vmatprep.subr.bf16.mxu0 0
    %556 = vmatpush1.bf16.msra.mxu0 0
    %557 = vmatprep.subr.bf16.mxu0 0
    %558 = vmatpush1.bf16.msra.mxu0 0
    %559 = vmatprep.subr.bf16.mxu0 0
    %560 = vmatpush1.bf16.msra.mxu0 0
    %561 = vmatprep.subr.bf16.mxu0 0
    %562 = vmatpush1.bf16.msra.mxu0 0
    %563 = vmatprep.subr.bf16.mxu0 0
    %564 = vmatpush1.bf16.msra.mxu0 0
    %565 = vmatprep.subr.bf16.mxu0 0
    %566 = vmatpush1.bf16.msra.mxu0 0
    %567 = vmatprep.subr.bf16.mxu0 0
    %568 = vmatpush1.bf16.msra.mxu0 0
    %569 = vmatprep.subr.bf16.mxu0 0
    %570 = vmatpush1.bf16.msra.mxu0 0
    %571 = vmatprep.subr.bf16.mxu0 0
    %572 = vmatpush1.bf16.msra.mxu0 0
    %573 = vmatprep.subr.bf16.mxu0 0
    %574 = vmatpush1.bf16.msra.mxu0 0
    %575 = vmatprep.mubr.bf16.mxu0 0
    %576 = vmatmul.mubr.bf16.gmra.mrb[0].mxu0 %v233
    %v577 = vpop.f32.mrb[0].mxu0
    %v578 = vadd.f32 %v474, %v577
    %v579 = vpop.f32.mrb[0].mxu0
    %v580 = vadd.f32 %v478, %v579
    %v581 = vpop.f32.mrb[0].mxu0
    %v582 = vadd.f32 %v474, %v581
    %v583 = vpop.f32.mrb[0].mxu0
    %v584 = vadd.f32 %v478, %v583
    %585 = vdwg.mxu0
    %v586 = vxor.u32 %v537, 2147483648
    %v587 = vxor.u32 %v540, 2147483648
    %v588 = vmul.f32 %v586, 1.442695
    %v589 = vpow.pop %v588
    %v590 = vmul.f32 %v587, 1.442695
    %v591 = vpow.pop %v590
    %v592 = vadd.f32 %v589, 1.0
    %v593 = vadd.f32 %v591, 1.0
    %v594 = vrcp.pop %v592
    %v595 = vmul.f32 1.0, %v594
    %v596 = vrcp.pop %v593
    %v597 = vmul.f32 1.0, %v596
    %v598 = vtanh.pop %v578
    %v599 = vtanh.pop %v582
    %v600 = vxor.u32 %v580, 2147483648
    %v601 = vxor.u32 %v584, 2147483648
    %v602 = vmul.f32 %v600, 1.442695
    %v603 = vpow.pop %v602
    %v604 = vmul.f32 %v601, 1.442695
    %v605 = vpow.pop %v604
    %v606 = vadd.f32 %v603, 1.0
    %v607 = vadd.f32 %v605, 1.0
    %v608 = vrcp.pop %v606
    %v609 = vmul.f32 1.0, %v608
    %v610 = vrcp.pop %v607
    %v611 = vmul.f32 1.0, %v610
    %v612 = vmul.f32 %v595, %v598
    %v613 = vmul.f32 %v597, %v599
    %v614 = vtanh.pop %v612
    %v615 = vtanh.pop %v613
    %v616 = vmul.f32 %v609, %v614
    %v617 = vmul.f32 %v611, %v615
    %v618 = vld [vmem:[#allocation5] sm:$0xff]
    %v619 = vld [vmem:[#allocation5 + $0x8] sm:$0xff]
    %v620 = vld [vmem:[#allocation5 + $0x10] sm:$0xff]
    %v621 = vld [vmem:[#allocation5 + $0x18] sm:$0xff]
    %v622 = vld [vmem:[#allocation5 + $0x20] sm:$0xff]
    %v623 = vld [vmem:[#allocation5 + $0x28] sm:$0xff]
    %v624 = vld [vmem:[#allocation5 + $0x30] sm:$0xff]
    %v625 = vld [vmem:[#allocation5 + $0x38] sm:$0xff]
    %v626 = vld [vmem:[#allocation5 + $0x40] sm:$0xff]
    %v627 = vld [vmem:[#allocation5 + $0x48] sm:$0xff]
    %v628 = vld [vmem:[#allocation5 + $0x50] sm:$0xff]
    %v629 = vld [vmem:[#allocation5 + $0x58] sm:$0xff]
    %v630 = vld [vmem:[#allocation5 + $0x60] sm:$0xff]
    %v631 = vld [vmem:[#allocation5 + $0x68] sm:$0xff]
    %v632 = vld [vmem:[#allocation5 + $0x70] sm:$0xff]
    %v633 = vld [vmem:[#allocation5 + $0x78] sm:$0xff]
    %v634 = vld [vmem:[#allocation5 + $0x80] sm:$0xff]
    %v635 = vld [vmem:[#allocation5 + $0x88] sm:$0xff]
    %v636 = vld [vmem:[#allocation5 + $0x90] sm:$0xff]
    %v637 = vld [vmem:[#allocation5 + $0x98] sm:$0xff]
    %v638 = vld [vmem:[#allocation5 + $0xa0] sm:$0xff]
    %v639 = vld [vmem:[#allocation5 + $0xa8] sm:$0xff]
    %v640 = vld [vmem:[#allocation5 + $0xb0] sm:$0xff]
    %v641 = vld [vmem:[#allocation5 + $0xb8] sm:$0xff]
    %v642 = vld [vmem:[#allocation5 + $0xc0] sm:$0xff]
    %v643 = vld [vmem:[#allocation5 + $0xc8] sm:$0xff]
    %v644 = vld [vmem:[#allocation5 + $0xd0] sm:$0xff]
    %v645 = vld [vmem:[#allocation5 + $0xd8] sm:$0xff]
    %v646 = vld [vmem:[#allocation5 + $0xe0] sm:$0xff]
    %v647 = vld [vmem:[#allocation5 + $0xe8] sm:$0xff]
    %v648 = vld [vmem:[#allocation5 + $0xf0] sm:$0xff]
    %v649 = vld [vmem:[#allocation5 + $0xf8] sm:$0xff]
    %v682 = vunpack.c.l.b16 %v618
    %v683 = vunpack.c.h.b16 %v618
    %v684 = vunpack.c.l.b16 %v619
    %v685 = vunpack.c.h.b16 %v619
    %v686 = vunpack.c.l.b16 %v620
    %v687 = vunpack.c.h.b16 %v620
    %v688 = vunpack.c.l.b16 %v621
    %v689 = vunpack.c.h.b16 %v621
    %v690 = vunpack.c.l.b16 %v622
    %v691 = vunpack.c.h.b16 %v622
    %v692 = vunpack.c.l.b16 %v623
    %v693 = vunpack.c.h.b16 %v623
    %v694 = vunpack.c.l.b16 %v624
    %v695 = vunpack.c.h.b16 %v624
    %v696 = vunpack.c.l.b16 %v625
    %v697 = vunpack.c.h.b16 %v625
    %v698 = vunpack.c.l.b16 %v626
    %v699 = vunpack.c.h.b16 %v626
    %v700 = vunpack.c.l.b16 %v627
    %v701 = vunpack.c.h.b16 %v627
    %v702 = vunpack.c.l.b16 %v628
    %v703 = vunpack.c.h.b16 %v628
    %v704 = vunpack.c.l.b16 %v629
    %v705 = vunpack.c.h.b16 %v629
    %v706 = vunpack.c.l.b16 %v630
    %v707 = vunpack.c.h.b16 %v630
    %v708 = vunpack.c.l.b16 %v631
    %v709 = vunpack.c.h.b16 %v631
    %v710 = vunpack.c.l.b16 %v632
    %v711 = vunpack.c.h.b16 %v632
    %v712 = vunpack.c.l.b16 %v633
    %v713 = vunpack.c.h.b16 %v633
    %v714 = vunpack.c.l.b16 %v634
    %v715 = vunpack.c.h.b16 %v634
    %v716 = vunpack.c.l.b16 %v635
    %v717 = vunpack.c.h.b16 %v635
    %v718 = vunpack.c.l.b16 %v636
    %v719 = vunpack.c.h.b16 %v636
    %v720 = vunpack.c.l.b16 %v637
    %v721 = vunpack.c.h.b16 %v637
    %v722 = vunpack.c.l.b16 %v638
    %v723 = vunpack.c.h.b16 %v638
    %v724 = vunpack.c.l.b16 %v639
    %v725 = vunpack.c.h.b16 %v639
    %v726 = vunpack.c.l.b16 %v640
    %v727 = vunpack.c.h.b16 %v640
    %v728 = vunpack.c.l.b16 %v641
    %v729 = vunpack.c.h.b16 %v641
    %v730 = vunpack.c.l.b16 %v642
    %v731 = vunpack.c.h.b16 %v642
    %v732 = vunpack.c.l.b16 %v643
    %v733 = vunpack.c.h.b16 %v643
    %v734 = vunpack.c.l.b16 %v644
    %v735 = vunpack.c.h.b16 %v644
    %v736 = vunpack.c.l.b16 %v645
    %v737 = vunpack.c.h.b16 %v645
    %v738 = vunpack.c.l.b16 %v646
    %v739 = vunpack.c.h.b16 %v646
    %v740 = vunpack.c.l.b16 %v647
    %v741 = vunpack.c.h.b16 %v647
    %v742 = vunpack.c.l.b16 %v648
    %v743 = vunpack.c.h.b16 %v648
    %v744 = vunpack.c.l.b16 %v649
    %v745 = vunpack.c.h.b16 %v649
    %v746 = vpack.c.b16 %v686, %v682
    %v747 = vpack.c.b16 %v687, %v683
    %v748 = vpack.c.b16 %v688, %v684
    %v749 = vpack.c.b16 %v689, %v685
    %v750 = vpack.c.b16 %v694, %v690
    %v751 = vpack.c.b16 %v695, %v691
    %v752 = vpack.c.b16 %v696, %v692
    %v753 = vpack.c.b16 %v697, %v693
    %v754 = vpack.c.b16 %v702, %v698
    %v755 = vpack.c.b16 %v703, %v699
    %v756 = vpack.c.b16 %v704, %v700
    %v757 = vpack.c.b16 %v705, %v701
    %v758 = vpack.c.b16 %v710, %v706
    %v759 = vpack.c.b16 %v711, %v707
    %v760 = vpack.c.b16 %v712, %v708
    %v761 = vpack.c.b16 %v713, %v709
    %v762 = vpack.c.b16 %v718, %v714
    %v763 = vpack.c.b16 %v719, %v715
    %v764 = vpack.c.b16 %v720, %v716
    %v765 = vpack.c.b16 %v721, %v717
    %v766 = vpack.c.b16 %v726, %v722
    %v767 = vpack.c.b16 %v727, %v723
    %v768 = vpack.c.b16 %v728, %v724
    %v769 = vpack.c.b16 %v729, %v725
    %v770 = vpack.c.b16 %v734, %v730
    %v771 = vpack.c.b16 %v735, %v731
    %v772 = vpack.c.b16 %v736, %v732
    %v773 = vpack.c.b16 %v737, %v733
    %v774 = vpack.c.b16 %v742, %v738
    %v775 = vpack.c.b16 %v743, %v739
    %v776 = vpack.c.b16 %v744, %v740
    %v777 = vpack.c.b16 %v745, %v741
    %810 = vmatprep.subr.bf16.mxu0 %v747
    %811 = vmatpush1.bf16.msra.mxu0 %v746
    %812 = vmatprep.subr.bf16.mxu0 %v751
    %813 = vmatpush1.bf16.msra.mxu0 %v750
    %814 = vmatprep.subr.bf16.mxu0 %v755
    %815 = vmatpush1.bf16.msra.mxu0 %v754
    %816 = vmatprep.subr.bf16.mxu0 %v759
    %817 = vmatpush1.bf16.msra.mxu0 %v758
    %818 = vmatprep.subr.bf16.mxu0 %v763
    %819 = vmatpush1.bf16.msra.mxu0 %v762
    %820 = vmatprep.subr.bf16.mxu0 %v767
    %821 = vmatpush1.bf16.msra.mxu0 %v766
    %822 = vmatprep.subr.bf16.mxu0 %v771
    %823 = vmatpush1.bf16.msra.mxu0 %v770
    %824 = vmatprep.subr.bf16.mxu0 %v775
    %825 = vmatpush1.bf16.msra.mxu0 %v774
    %826 = vmatprep.subr.bf16.mxu0 0
    %827 = vmatpush1.bf16.msra.mxu0 0
    %828 = vmatprep.subr.bf16.mxu0 0
    %829 = vmatpush1.bf16.msra.mxu0 0
    %830 = vmatprep.subr.bf16.mxu0 0
    %831 = vmatpush1.bf16.msra.mxu0 0
    %832 = vmatprep.subr.bf16.mxu0 0
    %833 = vmatpush1.bf16.msra.mxu0 0
    %834 = vmatprep.subr.bf16.mxu0 0
    %835 = vmatpush1.bf16.msra.mxu0 0
    %836 = vmatprep.subr.bf16.mxu0 0
    %837 = vmatpush1.bf16.msra.mxu0 0
    %838 = vmatprep.subr.bf16.mxu0 0
    %839 = vmatpush1.bf16.msra.mxu0 0
    %840 = vmatprep.subr.bf16.mxu0 0
    %841 = vmatpush1.bf16.msra.mxu0 0
    %842 = vmatprep.mubr.bf16.mxu0 0
    %843 = vmatmul.mubr.bf16.gmra.mrb[0].mxu0 0
    %v844 = vpop.f32.mrb[0].mxu0
    %v845 = vadd.f32 0.0, %v844
    %v846 = vpop.f32.mrb[0].mxu0
    %v847 = vadd.f32 0.0, %v846
    %v848 = vpop.f32.mrb[0].mxu0
    %v849 = vadd.f32 0.0, %v848
    %v850 = vpop.f32.mrb[0].mxu0
    %v851 = vadd.f32 0.0, %v850
    %852 = vdwg.mxu0
    %853 = vmatprep.subr.bf16.mxu0 %v749
    %854 = vmatpush1.bf16.msra.mxu0 %v748
    %855 = vmatprep.subr.bf16.mxu0 %v753
    %856 = vmatpush1.bf16.msra.mxu0 %v752
    %857 = vmatprep.subr.bf16.mxu0 %v757
    %858 = vmatpush1.bf16.msra.mxu0 %v756
    %859 = vmatprep.subr.bf16.mxu0 %v761
    %860 = vmatpush1.bf16.msra.mxu0 %v760
    %861 = vmatprep.subr.bf16.mxu0 %v765
    %862 = vmatpush1.bf16.msra.mxu0 %v764
    %863 = vmatprep.subr.bf16.mxu0 %v769
    %864 = vmatpush1.bf16.msra.mxu0 %v768
    %865 = vmatprep.subr.bf16.mxu0 %v773
    %866 = vmatpush1.bf16.msra.mxu0 %v772
    %867 = vmatprep.subr.bf16.mxu0 %v777
    %868 = vmatpush1.bf16.msra.mxu0 %v776
    %869 = vmatprep.subr.bf16.mxu0 0
    %870 = vmatpush1.bf16.msra.mxu0 0
    %871 = vmatprep.subr.bf16.mxu0 0
    %872 = vmatpush1.bf16.msra.mxu0 0
    %873 = vmatprep.subr.bf16.mxu0 0
    %874 = vmatpush1.bf16.msra.mxu0 0
    %875 = vmatprep.subr.bf16.mxu0 0
    %876 = vmatpush1.bf16.msra.mxu0 0
    %877 = vmatprep.subr.bf16.mxu0 0
    %878 = vmatpush1.bf16.msra.mxu0 0
    %879 = vmatprep.subr.bf16.mxu0 0
    %880 = vmatpush1.bf16.msra.mxu0 0
    %881 = vmatprep.subr.bf16.mxu0 0
    %882 = vmatpush1.bf16.msra.mxu0 0
    %883 = vmatprep.subr.bf16.mxu0 0
    %884 = vmatpush1.bf16.msra.mxu0 0
    %885 = vmatprep.mubr.bf16.mxu0 0
    %886 = vmatmul.mubr.bf16.gmra.mrb[0].mxu0 0
    %v887 = vpop.f32.mrb[0].mxu0
    %v888 = vadd.f32 0.0, %v887
    %v889 = vpop.f32.mrb[0].mxu0
    %v890 = vadd.f32 0.0, %v889
    %v891 = vpop.f32.mrb[0].mxu0
    %v892 = vadd.f32 0.0, %v891
    %v893 = vpop.f32.mrb[0].mxu0
    %v894 = vadd.f32 0.0, %v893
    %895 = vdwg.mxu0
    %v896 = vadd.f32 %v270, %v845
    %v897 = vadd.f32 %v272, %v847
    %v898 = vadd.f32 %v383, %v888
    %v899 = vadd.f32 %v385, %v890
    %v900 = vadd.f32 %v274, %v849
    %v901 = vadd.f32 %v276, %v851
    %v902 = vadd.f32 %v387, %v892
    %v903 = vadd.f32 %v389, %v894
    %v904 = vxor.u32 %v896, 2147483648
    %v905 = vxor.u32 %v900, 2147483648
    %v906 = vmul.f32 %v904, 1.442695
    %v907 = vpow.pop %v906
    %v908 = vmul.f32 %v905, 1.442695
    %v909 = vpow.pop %v908
    %v910 = vadd.f32 %v907, 1.0
    %v911 = vadd.f32 %v909, 1.0
    %v912 = vrcp.pop %v910
    %v913 = vmul.f32 1.0, %v912
    %v914 = vrcp.pop %v911
    %v915 = vmul.f32 1.0, %v914
    %v916 = vxor.u32 %v897, 2147483648
    %v917 = vxor.u32 %v901, 2147483648
    %v918 = vmul.f32 %v916, 1.442695
    %v919 = vpow.pop %v918
    %v920 = vmul.f32 %v917, 1.442695
    %v921 = vpow.pop %v920
    %v922 = vadd.f32 %v919, 1.0
    %v923 = vadd.f32 %v921, 1.0
    %v924 = vrcp.pop %v922
    %v925 = vmul.f32 1.0, %v924
    %v926 = vrcp.pop %v923
    %v927 = vmul.f32 1.0, %v926
    %v928 = vtanh.pop %v898
    %v929 = vtanh.pop %v902
    %v930 = vxor.u32 %v899, 2147483648
    %v931 = vxor.u32 %v903, 2147483648
    %v932 = vmul.f32 %v930, 1.442695
    %v933 = vpow.pop %v932
    %v934 = vmul.f32 %v931, 1.442695
    %v935 = vpow.pop %v934
    %v936 = vadd.f32 %v933, 1.0
    %v937 = vadd.f32 %v935, 1.0
    %v938 = vrcp.pop %v936
    %v939 = vmul.f32 1.0, %v938
    %v940 = vrcp.pop %v937
    %v941 = vmul.f32 1.0, %v940
    %v942 = vmul.f32 %v925, 0.0
    %v943 = vmul.f32 %v927, 0.0
    %v944 = vmul.f32 %v913, %v928
    %v945 = vmul.f32 %v915, %v929
    %v946 = vadd.f32 %v942, %v944
    %v947 = vadd.f32 %v943, %v945
    %v948 = vtanh.pop %v946
    %v949 = vtanh.pop %v947
    %v950 = vmul.f32 %v939, %v948
    %v951 = vmul.f32 %v941, %v949
    %v952 = vpack.c.bf16 %v951, %v950
    %953 = vmatprep.subr.bf16.mxu0 %v747
    %954 = vmatpush1.bf16.msra.mxu0 %v746
    %955 = vmatprep.subr.bf16.mxu0 %v751
    %956 = vmatpush1.bf16.msra.mxu0 %v750
    %957 = vmatprep.subr.bf16.mxu0 %v755
    %958 = vmatpush1.bf16.msra.mxu0 %v754
    %959 = vmatprep.subr.bf16.mxu0 %v759
    %960 = vmatpush1.bf16.msra.mxu0 %v758
    %961 = vmatprep.subr.bf16.mxu0 %v763
    %962 = vmatpush1.bf16.msra.mxu0 %v762
    %963 = vmatprep.subr.bf16.mxu0 %v767
    %964 = vmatpush1.bf16.msra.mxu0 %v766
    %965 = vmatprep.subr.bf16.mxu0 %v771
    %966 = vmatpush1.bf16.msra.mxu0 %v770
    %967 = vmatprep.subr.bf16.mxu0 %v775
    %968 = vmatpush1.bf16.msra.mxu0 %v774
    %969 = vmatprep.subr.bf16.mxu0 0
    %970 = vmatpush1.bf16.msra.mxu0 0
    %971 = vmatprep.subr.bf16.mxu0 0
    %972 = vmatpush1.bf16.msra.mxu0 0
    %973 = vmatprep.subr.bf16.mxu0 0
    %974 = vmatpush1.bf16.msra.mxu0 0
    %975 = vmatprep.subr.bf16.mxu0 0
    %976 = vmatpush1.bf16.msra.mxu0 0
    %977 = vmatprep.subr.bf16.mxu0 0
    %978 = vmatpush1.bf16.msra.mxu0 0
    %979 = vmatprep.subr.bf16.mxu0 0
    %980 = vmatpush1.bf16.msra.mxu0 0
    %981 = vmatprep.subr.bf16.mxu0 0
    %982 = vmatpush1.bf16.msra.mxu0 0
    %983 = vmatprep.subr.bf16.mxu0 0
    %984 = vmatpush1.bf16.msra.mxu0 0
    %985 = vmatprep.mubr.bf16.mxu0 0
    %986 = vmatmul.mubr.bf16.gmra.mrb[0].mxu0 %v952
    %v987 = vpop.f32.mrb[0].mxu0
    %v988 = vadd.f32 0.0, %v987
    %v989 = vpop.f32.mrb[0].mxu0
    %v990 = vadd.f32 0.0, %v989
    %v991 = vpop.f32.mrb[0].mxu0
    %v992 = vadd.f32 0.0, %v991
    %v993 = vpop.f32.mrb[0].mxu0
    %v994 = vadd.f32 0.0, %v993
    %995 = vdwg.mxu0
    %996 = vmatprep.subr.bf16.mxu0 %v749
    %997 = vmatpush1.bf16.msra.mxu0 %v748
    %998 = vmatprep.subr.bf16.mxu0 %v753
    %999 = vmatpush1.bf16.msra.mxu0 %v752
    %1000 = vmatprep.subr.bf16.mxu0 %v757
    %1001 = vmatpush1.bf16.msra.mxu0 %v756
    %1002 = vmatprep.subr.bf16.mxu0 %v761
    %1003 = vmatpush1.bf16.msra.mxu0 %v760
    %1004 = vmatprep.subr.bf16.mxu0 %v765
    %1005 = vmatpush1.bf16.msra.mxu0 %v764
    %1006 = vmatprep.subr.bf16.mxu0 %v769
    %1007 = vmatpush1.bf16.msra.mxu0 %v768
    %1008 = vmatprep.subr.bf16.mxu0 %v773
    %1009 = vmatpush1.bf16.msra.mxu0 %v772
    %1010 = vmatprep.subr.bf16.mxu0 %v777
    %1011 = vmatpush1.bf16.msra.mxu0 %v776
    %1012 = vmatprep.subr.bf16.mxu0 0
    %1013 = vmatpush1.bf16.msra.mxu0 0
    %1014 = vmatprep.subr.bf16.mxu0 0
    %1015 = vmatpush1.bf16.msra.mxu0 0
    %1016 = vmatprep.subr.bf16.mxu0 0
    %1017 = vmatpush1.bf16.msra.mxu0 0
    %1018 = vmatprep.subr.bf16.mxu0 0
    %1019 = vmatpush1.bf16.msra.mxu0 0
    %1020 = vmatprep.subr.bf16.mxu0 0
    %1021 = vmatpush1.bf16.msra.mxu0 0
    %1022 = vmatprep.subr.bf16.mxu0 0
    %1023 = vmatpush1.bf16.msra.mxu0 0
    %1024 = vmatprep.subr.bf16.mxu0 0
    %1025 = vmatpush1.bf16.msra.mxu0 0
    %1026 = vmatprep.subr.bf16.mxu0 0
    %1027 = vmatpush1.bf16.msra.mxu0 0
    %1028 = vmatprep.mubr.bf16.mxu0 0
    %1029 = vmatmul.mubr.bf16.gmra.mrb[0].mxu0 %v952
    %v1030 = vpop.f32.mrb[0].mxu0
    %v1031 = vadd.f32 0.0, %v1030
    %v1032 = vpop.f32.mrb[0].mxu0
    %v1033 = vadd.f32 0.0, %v1032
    %v1034 = vpop.f32.mrb[0].mxu0
    %v1035 = vadd.f32 0.0, %v1034
    %v1036 = vpop.f32.mrb[0].mxu0
    %v1037 = vadd.f32 0.0, %v1036
    %1038 = vdwg.mxu0
    %v1039 = vadd.f32 %v280, %v988
    %v1040 = vadd.f32 %v282, %v990
    %v1041 = vadd.f32 %v393, %v1031
    %v1042 = vadd.f32 %v395, %v1033
    %v1043 = vadd.f32 %v284, %v992
    %v1044 = vadd.f32 %v286, %v994
    %v1045 = vadd.f32 %v397, %v1035
    %v1046 = vadd.f32 %v399, %v1037
    %v1047 = vxor.u32 %v1039, 2147483648
    %v1048 = vxor.u32 %v1043, 2147483648
    %v1049 = vmul.f32 %v1047, 1.442695
    %v1050 = vpow.pop %v1049
    %v1051 = vmul.f32 %v1048, 1.442695
    %v1052 = vpow.pop %v1051
    %v1053 = vadd.f32 %v1050, 1.0
    %v1054 = vadd.f32 %v1052, 1.0
    %v1055 = vrcp.pop %v1053
    %v1056 = vmul.f32 1.0, %v1055
    %v1057 = vrcp.pop %v1054
    %v1058 = vmul.f32 1.0, %v1057
    %v1059 = vxor.u32 %v1040, 2147483648
    %v1060 = vxor.u32 %v1044, 2147483648
    %v1061 = vmul.f32 %v1059, 1.442695
    %v1062 = vpow.pop %v1061
    %v1063 = vmul.f32 %v1060, 1.442695
    %v1064 = vpow.pop %v1063
    %v1065 = vadd.f32 %v1062, 1.0
    %v1066 = vadd.f32 %v1064, 1.0
    %v1067 = vrcp.pop %v1065
    %v1068 = vmul.f32 1.0, %v1067
    %v1069 = vrcp.pop %v1066
    %v1070 = vmul.f32 1.0, %v1069
    %v1071 = vtanh.pop %v1041
    %v1072 = vtanh.pop %v1045
    %v1073 = vxor.u32 %v1042, 2147483648
    %v1074 = vxor.u32 %v1046, 2147483648
    %v1075 = vmul.f32 %v1073, 1.442695
    %v1076 = vpow.pop %v1075
    %v1077 = vmul.f32 %v1074, 1.442695
    %v1078 = vpow.pop %v1077
    %v1079 = vadd.f32 %v1076, 1.0
    %v1080 = vadd.f32 %v1078, 1.0
    %v1081 = vrcp.pop %v1079
    %v1082 = vmul.f32 1.0, %v1081
    %v1083 = vrcp.pop %v1080
    %v1084 = vmul.f32 1.0, %v1083
    %v1085 = vmul.f32 %v1068, %v946
    %v1086 = vmul.f32 %v1070, %v947
    %v1087 = vmul.f32 %v1056, %v1071
    %v1088 = vmul.f32 %v1058, %v1072
    %v1089 = vadd.f32 %v1085, %v1087
    %v1090 = vadd.f32 %v1086, %v1088
    %v1091 = vtanh.pop %v1089
    %v1092 = vtanh.pop %v1090
    %v1093 = vmul.f32 %v1082, %v1091
    %v1094 = vmul.f32 %v1084, %v1092
    %v1095 = vpack.c.bf16 %v1094, %v1093
    %1096 = vmatprep.subr.bf16.mxu0 %v747
    %1097 = vmatpush1.bf16.msra.mxu0 %v746
    %1098 = vmatprep.subr.bf16.mxu0 %v751
    %1099 = vmatpush1.bf16.msra.mxu0 %v750
    %1100 = vmatprep.subr.bf16.mxu0 %v755
    %1101 = vmatpush1.bf16.msra.mxu0 %v754
    %1102 = vmatprep.subr.bf16.mxu0 %v759
    %1103 = vmatpush1.bf16.msra.mxu0 %v758
    %1104 = vmatprep.subr.bf16.mxu0 %v763
    %1105 = vmatpush1.bf16.msra.mxu0 %v762
    %1106 = vmatprep.subr.bf16.mxu0 %v767
    %1107 = vmatpush1.bf16.msra.mxu0 %v766
    %1108 = vmatprep.subr.bf16.mxu0 %v771
    %1109 = vmatpush1.bf16.msra.mxu0 %v770
    %1110 = vmatprep.subr.bf16.mxu0 %v775
    %1111 = vmatpush1.bf16.msra.mxu0 %v774
    %1112 = vmatprep.subr.bf16.mxu0 0
    %1113 = vmatpush1.bf16.msra.mxu0 0
    %1114 = vmatprep.subr.bf16.mxu0 0
    %1115 = vmatpush1.bf16.msra.mxu0 0
    %1116 = vmatprep.subr.bf16.mxu0 0
    %1117 = vmatpush1.bf16.msra.mxu0 0
    %1118 = vmatprep.subr.bf16.mxu0 0
    %1119 = vmatpush1.bf16.msra.mxu0 0
    %1120 = vmatprep.subr.bf16.mxu0 0
    %1121 = vmatpush1.bf16.msra.mxu0 0
    %1122 = vmatprep.subr.bf16.mxu0 0
    %1123 = vmatpush1.bf16.msra.mxu0 0
    %1124 = vmatprep.subr.bf16.mxu0 0
    %1125 = vmatpush1.bf16.msra.mxu0 0
    %1126 = vmatprep.subr.bf16.mxu0 0
    %1127 = vmatpush1.bf16.msra.mxu0 0
    %1128 = vmatprep.mubr.bf16.mxu0 0
    %1129 = vmatmul.mubr.bf16.gmra.mrb[0].mxu0 %v1095
    %v1130 = vpop.f32.mrb[0].mxu0
    %v1131 = vadd.f32 0.0, %v1130
    %v1132 = vpop.f32.mrb[0].mxu0
    %v1133 = vadd.f32 0.0, %v1132
    %v1134 = vpop.f32.mrb[0].mxu0
    %v1135 = vadd.f32 0.0, %v1134
    %v1136 = vpop.f32.mrb[0].mxu0
    %v1137 = vadd.f32 0.0, %v1136
    %1138 = vdwg.mxu0
    %1139 = vmatprep.subr.bf16.mxu0 %v749
    %1140 = vmatpush1.bf16.msra.mxu0 %v748
    %1141 = vmatprep.subr.bf16.mxu0 %v753
    %1142 = vmatpush1.bf16.msra.mxu0 %v752
    %1143 = vmatprep.subr.bf16.mxu0 %v757
    %1144 = vmatpush1.bf16.msra.mxu0 %v756
    %1145 = vmatprep.subr.bf16.mxu0 %v761
    %1146 = vmatpush1.bf16.msra.mxu0 %v760
    %1147 = vmatprep.subr.bf16.mxu0 %v765
    %1148 = vmatpush1.bf16.msra.mxu0 %v764
    %1149 = vmatprep.subr.bf16.mxu0 %v769
    %1150 = vmatpush1.bf16.msra.mxu0 %v768
    %1151 = vmatprep.subr.bf16.mxu0 %v773
    %1152 = vmatpush1.bf16.msra.mxu0 %v772
    %1153 = vmatprep.subr.bf16.mxu0 %v777
    %1154 = vmatpush1.bf16.msra.mxu0 %v776
    %1155 = vmatprep.subr.bf16.mxu0 0
    %1156 = vmatpush1.bf16.msra.mxu0 0
    %1157 = vmatprep.subr.bf16.mxu0 0
    %1158 = vmatpush1.bf16.msra.mxu0 0
    %1159 = vmatprep.subr.bf16.mxu0 0
    %1160 = vmatpush1.bf16.msra.mxu0 0
    %1161 = vmatprep.subr.bf16.mxu0 0
    %1162 = vmatpush1.bf16.msra.mxu0 0
    %1163 = vmatprep.subr.bf16.mxu0 0
    %1164 = vmatpush1.bf16.msra.mxu0 0
    %1165 = vmatprep.subr.bf16.mxu0 0
    %1166 = vmatpush1.bf16.msra.mxu0 0
    %1167 = vmatprep.subr.bf16.mxu0 0
    %1168 = vmatpush1.bf16.msra.mxu0 0
    %1169 = vmatprep.subr.bf16.mxu0 0
    %1170 = vmatpush1.bf16.msra.mxu0 0
    %1171 = vmatprep.mubr.bf16.mxu0 0
    %1172 = vmatmul.mubr.bf16.gmra.mrb[0].mxu0 %v1095
    %v1173 = vpop.f32.mrb[0].mxu0
    %v1174 = vadd.f32 0.0, %v1173
    %v1175 = vpop.f32.mrb[0].mxu0
    %v1176 = vadd.f32 0.0, %v1175
    %v1177 = vpop.f32.mrb[0].mxu0
    %v1178 = vadd.f32 0.0, %v1177
    %v1179 = vpop.f32.mrb[0].mxu0
    %v1180 = vadd.f32 0.0, %v1179
    %1181 = vdwg.mxu0
    %v1182 = vadd.f32 %v290, %v1131
    %v1183 = vadd.f32 %v292, %v1133
    %v1184 = vadd.f32 %v403, %v1174
    %v1185 = vadd.f32 %v405, %v1176
    %v1186 = vadd.f32 %v294, %v1135
    %v1187 = vadd.f32 %v296, %v1137
    %v1188 = vadd.f32 %v407, %v1178
    %v1189 = vadd.f32 %v409, %v1180
    %v1190 = vxor.u32 %v1182, 2147483648
    %v1191 = vxor.u32 %v1186, 2147483648
    %v1192 = vmul.f32 %v1190, 1.442695
    %v1193 = vpow.pop %v1192
    %v1194 = vmul.f32 %v1191, 1.442695
    %v1195 = vpow.pop %v1194
    %v1196 = vadd.f32 %v1193, 1.0
    %v1197 = vadd.f32 %v1195, 1.0
    %v1198 = vrcp.pop %v1196
    %v1199 = vmul.f32 1.0, %v1198
    %v1200 = vrcp.pop %v1197
    %v1201 = vmul.f32 1.0, %v1200
    %v1202 = vxor.u32 %v1183, 2147483648
    %v1203 = vxor.u32 %v1187, 2147483648
    %v1204 = vmul.f32 %v1202, 1.442695
    %v1205 = vpow.pop %v1204
    %v1206 = vmul.f32 %v1203, 1.442695
    %v1207 = vpow.pop %v1206
    %v1208 = vadd.f32 %v1205, 1.0
    %v1209 = vadd.f32 %v1207, 1.0
    %v1210 = vrcp.pop %v1208
    %v1211 = vmul.f32 1.0, %v1210
    %v1212 = vrcp.pop %v1209
    %v1213 = vmul.f32 1.0, %v1212
    %v1214 = vtanh.pop %v1184
    %v1215 = vtanh.pop %v1188
    %v1216 = vxor.u32 %v1185, 2147483648
    %v1217 = vxor.u32 %v1189, 2147483648
    %v1218 = vmul.f32 %v1216, 1.442695
    %v1219 = vpow.pop %v1218
    %v1220 = vmul.f32 %v1217, 1.442695
    %v1221 = vpow.pop %v1220
    %v1222 = vadd.f32 %v1219, 1.0
    %v1223 = vadd.f32 %v1221, 1.0
    %v1224 = vrcp.pop %v1222
    %v1225 = vmul.f32 1.0, %v1224
    %v1226 = vrcp.pop %v1223
    %v1227 = vmul.f32 1.0, %v1226
    %v1228 = vmul.f32 %v1211, %v1089
    %v1229 = vmul.f32 %v1213, %v1090
    %v1230 = vmul.f32 %v1199, %v1214
    %v1231 = vmul.f32 %v1201, %v1215
    %v1232 = vadd.f32 %v1228, %v1230
    %v1233 = vadd.f32 %v1229, %v1231
    %v1234 = vtanh.pop %v1232
    %v1235 = vtanh.pop %v1233
    %v1236 = vmul.f32 %v1225, %v1234
    %v1237 = vmul.f32 %v1227, %v1235
    %v1238 = vpack.c.bf16 %v1237, %v1236
    %1239 = vmatprep.subr.bf16.mxu0 %v747
    %1240 = vmatpush1.bf16.msra.mxu0 %v746
    %1241 = vmatprep.subr.bf16.mxu0 %v751
    %1242 = vmatpush1.bf16.msra.mxu0 %v750
    %1243 = vmatprep.subr.bf16.mxu0 %v755
    %1244 = vmatpush1.bf16.msra.mxu0 %v754
    %1245 = vmatprep.subr.bf16.mxu0 %v759
    %1246 = vmatpush1.bf16.msra.mxu0 %v758
    %1247 = vmatprep.subr.bf16.mxu0 %v763
    %1248 = vmatpush1.bf16.msra.mxu0 %v762
    %1249 = vmatprep.subr.bf16.mxu0 %v767
    %1250 = vmatpush1.bf16.msra.mxu0 %v766
    %1251 = vmatprep.subr.bf16.mxu0 %v771
    %1252 = vmatpush1.bf16.msra.mxu0 %v770
    %1253 = vmatprep.subr.bf16.mxu0 %v775
    %1254 = vmatpush1.bf16.msra.mxu0 %v774
    %1255 = vmatprep.subr.bf16.mxu0 0
    %1256 = vmatpush1.bf16.msra.mxu0 0
    %1257 = vmatprep.subr.bf16.mxu0 0
    %1258 = vmatpush1.bf16.msra.mxu0 0
    %1259 = vmatprep.subr.bf16.mxu0 0
    %1260 = vmatpush1.bf16.msra.mxu0 0
    %1261 = vmatprep.subr.bf16.mxu0 0
    %1262 = vmatpush1.bf16.msra.mxu0 0
    %1263 = vmatprep.subr.bf16.mxu0 0
    %1264 = vmatpush1.bf16.msra.mxu0 0
    %1265 = vmatprep.subr.bf16.mxu0 0
    %1266 = vmatpush1.bf16.msra.mxu0 0
    %1267 = vmatprep.subr.bf16.mxu0 0
    %1268 = vmatpush1.bf16.msra.mxu0 0
    %1269 = vmatprep.subr.bf16.mxu0 0
    %1270 = vmatpush1.bf16.msra.mxu0 0
    %1271 = vmatprep.mubr.bf16.mxu0 0
    %1272 = vmatmul.mubr.bf16.gmra.mrb[0].mxu0 %v1238
    %v1273 = vpop.f32.mrb[0].mxu0
    %v1274 = vadd.f32 0.0, %v1273
    %v1275 = vpop.f32.mrb[0].mxu0
    %v1276 = vadd.f32 0.0, %v1275
    %v1277 = vpop.f32.mrb[0].mxu0
    %v1278 = vadd.f32 0.0, %v1277
    %v1279 = vpop.f32.mrb[0].mxu0
    %v1280 = vadd.f32 0.0, %v1279
    %1281 = vdwg.mxu0
    %1282 = vmatprep.subr.bf16.mxu0 %v749
    %1283 = vmatpush1.bf16.msra.mxu0 %v748
    %1284 = vmatprep.subr.bf16.mxu0 %v753
    %1285 = vmatpush1.bf16.msra.mxu0 %v752
    %1286 = vmatprep.subr.bf16.mxu0 %v757
    %1287 = vmatpush1.bf16.msra.mxu0 %v756
    %1288 = vmatprep.subr.bf16.mxu0 %v761
    %1289 = vmatpush1.bf16.msra.mxu0 %v760
    %1290 = vmatprep.subr.bf16.mxu0 %v765
    %1291 = vmatpush1.bf16.msra.mxu0 %v764
    %1292 = vmatprep.subr.bf16.mxu0 %v769
    %1293 = vmatpush1.bf16.msra.mxu0 %v768
    %1294 = vmatprep.subr.bf16.mxu0 %v773
    %1295 = vmatpush1.bf16.msra.mxu0 %v772
    %1296 = vmatprep.subr.bf16.mxu0 %v777
    %1297 = vmatpush1.bf16.msra.mxu0 %v776
    %1298 = vmatprep.subr.bf16.mxu0 0
    %1299 = vmatpush1.bf16.msra.mxu0 0
    %1300 = vmatprep.subr.bf16.mxu0 0
    %1301 = vmatpush1.bf16.msra.mxu0 0
    %1302 = vmatprep.subr.bf16.mxu0 0
    %1303 = vmatpush1.bf16.msra.mxu0 0
    %1304 = vmatprep.subr.bf16.mxu0 0
    %1305 = vmatpush1.bf16.msra.mxu0 0
    %1306 = vmatprep.subr.bf16.mxu0 0
    %1307 = vmatpush1.bf16.msra.mxu0 0
    %1308 = vmatprep.subr.bf16.mxu0 0
    %1309 = vmatpush1.bf16.msra.mxu0 0
    %1310 = vmatprep.subr.bf16.mxu0 0
    %1311 = vmatpush1.bf16.msra.mxu0 0
    %1312 = vmatprep.subr.bf16.mxu0 0
    %1313 = vmatpush1.bf16.msra.mxu0 0
    %1314 = vmatprep.mubr.bf16.mxu0 0
    %1315 = vmatmul.mubr.bf16.gmra.mrb[0].mxu0 %v1238
    %v1316 = vpop.f32.mrb[0].mxu0
    %v1317 = vadd.f32 0.0, %v1316
    %v1318 = vpop.f32.mrb[0].mxu0
    %v1319 = vadd.f32 0.0, %v1318
    %v1320 = vpop.f32.mrb[0].mxu0
    %v1321 = vadd.f32 0.0, %v1320
    %v1322 = vpop.f32.mrb[0].mxu0
    %v1323 = vadd.f32 0.0, %v1322
    %1324 = vdwg.mxu0
    %v1325 = vadd.f32 %v300, %v1274
    %v1326 = vadd.f32 %v302, %v1276
    %v1327 = vadd.f32 %v413, %v1317
    %v1328 = vadd.f32 %v415, %v1319
    %v1329 = vadd.f32 %v304, %v1278
    %v1330 = vadd.f32 %v306, %v1280
    %v1331 = vadd.f32 %v417, %v1321
    %v1332 = vadd.f32 %v419, %v1323
    %v1333 = vxor.u32 %v1325, 2147483648
    %v1334 = vxor.u32 %v1329, 2147483648
    %v1335 = vmul.f32 %v1333, 1.442695
    %v1336 = vpow.pop %v1335
    %v1337 = vmul.f32 %v1334, 1.442695
    %v1338 = vpow.pop %v1337
    %v1339 = vadd.f32 %v1336, 1.0
    %v1340 = vadd.f32 %v1338, 1.0
    %v1341 = vrcp.pop %v1339
    %v1342 = vmul.f32 1.0, %v1341
    %v1343 = vrcp.pop %v1340
    %v1344 = vmul.f32 1.0, %v1343
    %v1345 = vxor.u32 %v1326, 2147483648
    %v1346 = vxor.u32 %v1330, 2147483648
    %v1347 = vmul.f32 %v1345, 1.442695
    %v1348 = vpow.pop %v1347
    %v1349 = vmul.f32 %v1346, 1.442695
    %v1350 = vpow.pop %v1349
    %v1351 = vadd.f32 %v1348, 1.0
    %v1352 = vadd.f32 %v1350, 1.0
    %v1353 = vrcp.pop %v1351
    %v1354 = vmul.f32 1.0, %v1353
    %v1355 = vrcp.pop %v1352
    %v1356 = vmul.f32 1.0, %v1355
    %v1357 = vtanh.pop %v1327
    %v1358 = vtanh.pop %v1331
    %v1359 = vxor.u32 %v1328, 2147483648
    %v1360 = vxor.u32 %v1332, 2147483648
    %v1361 = vmul.f32 %v1359, 1.442695
    %v1362 = vpow.pop %v1361
    %v1363 = vmul.f32 %v1360, 1.442695
    %v1364 = vpow.pop %v1363
    %v1365 = vadd.f32 %v1362, 1.0
    %v1366 = vadd.f32 %v1364, 1.0
    %v1367 = vrcp.pop %v1365
    %v1368 = vmul.f32 1.0, %v1367
    %v1369 = vrcp.pop %v1366
    %v1370 = vmul.f32 1.0, %v1369
    %v1371 = vmul.f32 %v1354, %v1232
    %v1372 = vmul.f32 %v1356, %v1233
    %v1373 = vmul.f32 %v1342, %v1357
    %v1374 = vmul.f32 %v1344, %v1358
    %v1375 = vadd.f32 %v1371, %v1373
    %v1376 = vadd.f32 %v1372, %v1374
    %v1377 = vtanh.pop %v1375
    %v1378 = vtanh.pop %v1376
    %v1379 = vmul.f32 %v1368, %v1377
    %v1380 = vmul.f32 %v1370, %v1378
    %v1381 = vpack.c.bf16 %v1380, %v1379
    %1382 = vmatprep.subr.bf16.mxu0 %v747
    %1383 = vmatpush1.bf16.msra.mxu0 %v746
    %1384 = vmatprep.subr.bf16.mxu0 %v751
    %1385 = vmatpush1.bf16.msra.mxu0 %v750
    %1386 = vmatprep.subr.bf16.mxu0 %v755
    %1387 = vmatpush1.bf16.msra.mxu0 %v754
    %1388 = vmatprep.subr.bf16.mxu0 %v759
    %1389 = vmatpush1.bf16.msra.mxu0 %v758
    %1390 = vmatprep.subr.bf16.mxu0 %v763
    %1391 = vmatpush1.bf16.msra.mxu0 %v762
    %1392 = vmatprep.subr.bf16.mxu0 %v767
    %1393 = vmatpush1.bf16.msra.mxu0 %v766
    %1394 = vmatprep.subr.bf16.mxu0 %v771
    %1395 = vmatpush1.bf16.msra.mxu0 %v770
    %1396 = vmatprep.subr.bf16.mxu0 %v775
    %1397 = vmatpush1.bf16.msra.mxu0 %v774
    %1398 = vmatprep.subr.bf16.mxu0 0
    %1399 = vmatpush1.bf16.msra.mxu0 0
    %1400 = vmatprep.subr.bf16.mxu0 0
    %1401 = vmatpush1.bf16.msra.mxu0 0
    %1402 = vmatprep.subr.bf16.mxu0 0
    %1403 = vmatpush1.bf16.msra.mxu0 0
    %1404 = vmatprep.subr.bf16.mxu0 0
    %1405 = vmatpush1.bf16.msra.mxu0 0
    %1406 = vmatprep.subr.bf16.mxu0 0
    %1407 = vmatpush1.bf16.msra.mxu0 0
    %1408 = vmatprep.subr.bf16.mxu0 0
    %1409 = vmatpush1.bf16.msra.mxu0 0
    %1410 = vmatprep.subr.bf16.mxu0 0
    %1411 = vmatpush1.bf16.msra.mxu0 0
    %1412 = vmatprep.subr.bf16.mxu0 0
    %1413 = vmatpush1.bf16.msra.mxu0 0
    %1414 = vmatprep.mubr.bf16.mxu0 0
    %1415 = vmatmul.mubr.bf16.gmra.mrb[0].mxu0 %v1381
    %v1416 = vpop.f32.mrb[0].mxu0
    %v1417 = vadd.f32 0.0, %v1416
    %v1418 = vpop.f32.mrb[0].mxu0
    %v1419 = vadd.f32 0.0, %v1418
    %v1420 = vpop.f32.mrb[0].mxu0
    %v1421 = vadd.f32 0.0, %v1420
    %v1422 = vpop.f32.mrb[0].mxu0
    %v1423 = vadd.f32 0.0, %v1422
    %1424 = vdwg.mxu0
    %1425 = vmatprep.subr.bf16.mxu0 %v749
    %1426 = vmatpush1.bf16.msra.mxu0 %v748
    %1427 = vmatprep.subr.bf16.mxu0 %v753
    %1428 = vmatpush1.bf16.msra.mxu0 %v752
    %1429 = vmatprep.subr.bf16.mxu0 %v757
    %1430 = vmatpush1.bf16.msra.mxu0 %v756
    %1431 = vmatprep.subr.bf16.mxu0 %v761
    %1432 = vmatpush1.bf16.msra.mxu0 %v760
    %1433 = vmatprep.subr.bf16.mxu0 %v765
    %1434 = vmatpush1.bf16.msra.mxu0 %v764
    %1435 = vmatprep.subr.bf16.mxu0 %v769
    %1436 = vmatpush1.bf16.msra.mxu0 %v768
    %1437 = vmatprep.subr.bf16.mxu0 %v773
    %1438 = vmatpush1.bf16.msra.mxu0 %v772
    %1439 = vmatprep.subr.bf16.mxu0 %v777
    %1440 = vmatpush1.bf16.msra.mxu0 %v776
    %1441 = vmatprep.subr.bf16.mxu0 0
    %1442 = vmatpush1.bf16.msra.mxu0 0
    %1443 = vmatprep.subr.bf16.mxu0 0
    %1444 = vmatpush1.bf16.msra.mxu0 0
    %1445 = vmatprep.subr.bf16.mxu0 0
    %1446 = vmatpush1.bf16.msra.mxu0 0
    %1447 = vmatprep.subr.bf16.mxu0 0
    %1448 = vmatpush1.bf16.msra.mxu0 0
    %1449 = vmatprep.subr.bf16.mxu0 0
    %1450 = vmatpush1.bf16.msra.mxu0 0
    %1451 = vmatprep.subr.bf16.mxu0 0
    %1452 = vmatpush1.bf16.msra.mxu0 0
    %1453 = vmatprep.subr.bf16.mxu0 0
    %1454 = vmatpush1.bf16.msra.mxu0 0
    %1455 = vmatprep.subr.bf16.mxu0 0
    %1456 = vmatpush1.bf16.msra.mxu0 0
    %1457 = vmatprep.mubr.bf16.mxu0 0
    %1458 = vmatmul.mubr.bf16.gmra.mrb[0].mxu0 %v1381
    %v1459 = vpop.f32.mrb[0].mxu0
    %v1460 = vadd.f32 0.0, %v1459
    %v1461 = vpop.f32.mrb[0].mxu0
    %v1462 = vadd.f32 0.0, %v1461
    %v1463 = vpop.f32.mrb[0].mxu0
    %v1464 = vadd.f32 0.0, %v1463
    %v1465 = vpop.f32.mrb[0].mxu0
    %v1466 = vadd.f32 0.0, %v1465
    %1467 = vdwg.mxu0
    %v1468 = vadd.f32 %v310, %v1417
    %v1469 = vadd.f32 %v312, %v1419
    %v1470 = vadd.f32 %v423, %v1460
    %v1471 = vadd.f32 %v425, %v1462
    %v1472 = vadd.f32 %v314, %v1421
    %v1473 = vadd.f32 %v316, %v1423
    %v1474 = vadd.f32 %v427, %v1464
    %v1475 = vadd.f32 %v429, %v1466
    %v1476 = vxor.u32 %v1468, 2147483648
    %v1477 = vxor.u32 %v1472, 2147483648
    %v1478 = vmul.f32 %v1476, 1.442695
    %v1479 = vpow.pop %v1478
    %v1480 = vmul.f32 %v1477, 1.442695
    %v1481 = vpow.pop %v1480
    %v1482 = vadd.f32 %v1479, 1.0
    %v1483 = vadd.f32 %v1481, 1.0
    %v1484 = vrcp.pop %v1482
    %v1485 = vmul.f32 1.0, %v1484
    %v1486 = vrcp.pop %v1483
    %v1487 = vmul.f32 1.0, %v1486
    %v1488 = vxor.u32 %v1469, 2147483648
    %v1489 = vxor.u32 %v1473, 2147483648
    %v1490 = vmul.f32 %v1488, 1.442695
    %v1491 = vpow.pop %v1490
    %v1492 = vmul.f32 %v1489, 1.442695
    %v1493 = vpow.pop %v1492
    %v1494 = vadd.f32 %v1491, 1.0
    %v1495 = vadd.f32 %v1493, 1.0
    %v1496 = vrcp.pop %v1494
    %v1497 = vmul.f32 1.0, %v1496
    %v1498 = vrcp.pop %v1495
    %v1499 = vmul.f32 1.0, %v1498
    %v1500 = vtanh.pop %v1470
    %v1501 = vtanh.pop %v1474
    %v1502 = vxor.u32 %v1471, 2147483648
    %v1503 = vxor.u32 %v1475, 2147483648
    %v1504 = vmul.f32 %v1502, 1.442695
    %v1505 = vpow.pop %v1504
    %v1506 = vmul.f32 %v1503, 1.442695
    %v1507 = vpow.pop %v1506
    %v1508 = vadd.f32 %v1505, 1.0
    %v1509 = vadd.f32 %v1507, 1.0
    %v1510 = vrcp.pop %v1508
    %v1511 = vmul.f32 1.0, %v1510
    %v1512 = vrcp.pop %v1509
    %v1513 = vmul.f32 1.0, %v1512
    %v1514 = vmul.f32 %v1497, %v1375
    %v1515 = vmul.f32 %v1499, %v1376
    %v1516 = vmul.f32 %v1485, %v1500
    %v1517 = vmul.f32 %v1487, %v1501
    %v1518 = vadd.f32 %v1514, %v1516
    %v1519 = vadd.f32 %v1515, %v1517
    %v1520 = vtanh.pop %v1518
    %v1521 = vtanh.pop %v1519
    %v1522 = vmul.f32 %v1511, %v1520
    %v1523 = vmul.f32 %v1513, %v1521
    %v1524 = vpack.c.bf16 %v1523, %v1522
    %1525 = vmatprep.subr.bf16.mxu0 %v747
    %1526 = vmatpush1.bf16.msra.mxu0 %v746
    %1527 = vmatprep.subr.bf16.mxu0 %v751
    %1528 = vmatpush1.bf16.msra.mxu0 %v750
    %1529 = vmatprep.subr.bf16.mxu0 %v755
    %1530 = vmatpush1.bf16.msra.mxu0 %v754
    %1531 = vmatprep.subr.bf16.mxu0 %v759
    %1532 = vmatpush1.bf16.msra.mxu0 %v758
    %1533 = vmatprep.subr.bf16.mxu0 %v763
    %1534 = vmatpush1.bf16.msra.mxu0 %v762
    %1535 = vmatprep.subr.bf16.mxu0 %v767
    %1536 = vmatpush1.bf16.msra.mxu0 %v766
    %1537 = vmatprep.subr.bf16.mxu0 %v771
    %1538 = vmatpush1.bf16.msra.mxu0 %v770
    %1539 = vmatprep.subr.bf16.mxu0 %v775
    %1540 = vmatpush1.bf16.msra.mxu0 %v774
    %1541 = vmatprep.subr.bf16.mxu0 0
    %1542 = vmatpush1.bf16.msra.mxu0 0
    %1543 = vmatprep.subr.bf16.mxu0 0
    %1544 = vmatpush1.bf16.msra.mxu0 0
    %1545 = vmatprep.subr.bf16.mxu0 0
    %1546 = vmatpush1.bf16.msra.mxu0 0
    %1547 = vmatprep.subr.bf16.mxu0 0
    %1548 = vmatpush1.bf16.msra.mxu0 0
    %1549 = vmatprep.subr.bf16.mxu0 0
    %1550 = vmatpush1.bf16.msra.mxu0 0
    %1551 = vmatprep.subr.bf16.mxu0 0
    %1552 = vmatpush1.bf16.msra.mxu0 0
    %1553 = vmatprep.subr.bf16.mxu0 0
    %1554 = vmatpush1.bf16.msra.mxu0 0
    %1555 = vmatprep.subr.bf16.mxu0 0
    %1556 = vmatpush1.bf16.msra.mxu0 0
    %1557 = vmatprep.mubr.bf16.mxu0 0
    %1558 = vmatmul.mubr.bf16.gmra.mrb[0].mxu0 %v1524
    %v1559 = vpop.f32.mrb[0].mxu0
    %v1560 = vadd.f32 0.0, %v1559
    %v1561 = vpop.f32.mrb[0].mxu0
    %v1562 = vadd.f32 0.0, %v1561
    %v1563 = vpop.f32.mrb[0].mxu0
    %v1564 = vadd.f32 0.0, %v1563
    %v1565 = vpop.f32.mrb[0].mxu0
    %v1566 = vadd.f32 0.0, %v1565
    %1567 = vdwg.mxu0
    %1568 = vmatprep.subr.bf16.mxu0 %v749
    %1569 = vmatpush1.bf16.msra.mxu0 %v748
    %1570 = vmatprep.subr.bf16.mxu0 %v753
    %1571 = vmatpush1.bf16.msra.mxu0 %v752
    %1572 = vmatprep.subr.bf16.mxu0 %v757
    %1573 = vmatpush1.bf16.msra.mxu0 %v756
    %1574 = vmatprep.subr.bf16.mxu0 %v761
    %1575 = vmatpush1.bf16.msra.mxu0 %v760
    %1576 = vmatprep.subr.bf16.mxu0 %v765
    %1577 = vmatpush1.bf16.msra.mxu0 %v764
    %1578 = vmatprep.subr.bf16.mxu0 %v769
    %1579 = vmatpush1.bf16.msra.mxu0 %v768
    %1580 = vmatprep.subr.bf16.mxu0 %v773
    %1581 = vmatpush1.bf16.msra.mxu0 %v772
    %1582 = vmatprep.subr.bf16.mxu0 %v777
    %1583 = vmatpush1.bf16.msra.mxu0 %v776
    %1584 = vmatprep.subr.bf16.mxu0 0
    %1585 = vmatpush1.bf16.msra.mxu0 0
    %1586 = vmatprep.subr.bf16.mxu0 0
    %1587 = vmatpush1.bf16.msra.mxu0 0
    %1588 = vmatprep.subr.bf16.mxu0 0
    %1589 = vmatpush1.bf16.msra.mxu0 0
    %1590 = vmatprep.subr.bf16.mxu0 0
    %1591 = vmatpush1.bf16.msra.mxu0 0
    %1592 = vmatprep.subr.bf16.mxu0 0
    %1593 = vmatpush1.bf16.msra.mxu0 0
    %1594 = vmatprep.subr.bf16.mxu0 0
    %1595 = vmatpush1.bf16.msra.mxu0 0
    %1596 = vmatprep.subr.bf16.mxu0 0
    %1597 = vmatpush1.bf16.msra.mxu0 0
    %1598 = vmatprep.subr.bf16.mxu0 0
    %1599 = vmatpush1.bf16.msra.mxu0 0
    %1600 = vmatprep.mubr.bf16.mxu0 0
    %1601 = vmatmul.mubr.bf16.gmra.mrb[0].mxu0 %v1524
    %v1602 = vpop.f32.mrb[0].mxu0
    %v1603 = vadd.f32 0.0, %v1602
    %v1604 = vpop.f32.mrb[0].mxu0
    %v1605 = vadd.f32 0.0, %v1604
    %v1606 = vpop.f32.mrb[0].mxu0
    %v1607 = vadd.f32 0.0, %v1606
    %v1608 = vpop.f32.mrb[0].mxu0
    %v1609 = vadd.f32 0.0, %v1608
    %1610 = vdwg.mxu0
    %v1611 = vadd.f32 %v320, %v1560
    %v1612 = vadd.f32 %v322, %v1562
    %v1613 = vadd.f32 %v433, %v1603
    %v1614 = vadd.f32 %v435, %v1605
    %v1615 = vadd.f32 %v324, %v1564
    %v1616 = vadd.f32 %v326, %v1566
    %v1617 = vadd.f32 %v437, %v1607
    %v1618 = vadd.f32 %v439, %v1609
    %v1619 = vxor.u32 %v1611, 2147483648
    %v1620 = vxor.u32 %v1615, 2147483648
    %v1621 = vmul.f32 %v1619, 1.442695
    %v1622 = vpow.pop %v1621
    %v1623 = vmul.f32 %v1620, 1.442695
    %v1624 = vpow.pop %v1623
    %v1625 = vadd.f32 %v1622, 1.0
    %v1626 = vadd.f32 %v1624, 1.0
    %v1627 = vrcp.pop %v1625
    %v1628 = vmul.f32 1.0, %v1627
    %v1629 = vrcp.pop %v1626
    %v1630 = vmul.f32 1.0, %v1629
    %v1631 = vxor.u32 %v1612, 2147483648
    %v1632 = vxor.u32 %v1616, 2147483648
    %v1633 = vmul.f32 %v1631, 1.442695
    %v1634 = vpow.pop %v1633
    %v1635 = vmul.f32 %v1632, 1.442695
    %v1636 = vpow.pop %v1635
    %v1637 = vadd.f32 %v1634, 1.0
    %v1638 = vadd.f32 %v1636, 1.0
    %v1639 = vrcp.pop %v1637
    %v1640 = vmul.f32 1.0, %v1639
    %v1641 = vrcp.pop %v1638
    %v1642 = vmul.f32 1.0, %v1641
    %v1643 = vtanh.pop %v1613
    %v1644 = vtanh.pop %v1617
    %v1645 = vxor.u32 %v1614, 2147483648
    %v1646 = vxor.u32 %v1618, 2147483648
    %v1647 = vmul.f32 %v1645, 1.442695
    %v1648 = vpow.pop %v1647
    %v1649 = vmul.f32 %v1646, 1.442695
    %v1650 = vpow.pop %v1649
    %v1651 = vadd.f32 %v1648, 1.0
    %v1652 = vadd.f32 %v1650, 1.0
    %v1653 = vrcp.pop %v1651
    %v1654 = vmul.f32 1.0, %v1653
    %v1655 = vrcp.pop %v1652
    %v1656 = vmul.f32 1.0, %v1655
    %v1657 = vmul.f32 %v1640, %v1518
    %v1658 = vmul.f32 %v1642, %v1519
    %v1659 = vmul.f32 %v1628, %v1643
    %v1660 = vmul.f32 %v1630, %v1644
    %v1661 = vadd.f32 %v1657, %v1659
    %v1662 = vadd.f32 %v1658, %v1660
    %v1663 = vtanh.pop %v1661
    %v1664 = vtanh.pop %v1662
    %v1665 = vmul.f32 %v1654, %v1663
    %v1666 = vmul.f32 %v1656, %v1664
    %v1667 = vpack.c.bf16 %v1666, %v1665
    %1668 = vmatprep.subr.bf16.mxu0 %v747
    %1669 = vmatpush1.bf16.msra.mxu0 %v746
    %1670 = vmatprep.subr.bf16.mxu0 %v751
    %1671 = vmatpush1.bf16.msra.mxu0 %v750
    %1672 = vmatprep.subr.bf16.mxu0 %v755
    %1673 = vmatpush1.bf16.msra.mxu0 %v754
    %1674 = vmatprep.subr.bf16.mxu0 %v759
    %1675 = vmatpush1.bf16.msra.mxu0 %v758
    %1676 = vmatprep.subr.bf16.mxu0 %v763
    %1677 = vmatpush1.bf16.msra.mxu0 %v762
    %1678 = vmatprep.subr.bf16.mxu0 %v767
    %1679 = vmatpush1.bf16.msra.mxu0 %v766
    %1680 = vmatprep.subr.bf16.mxu0 %v771
    %1681 = vmatpush1.bf16.msra.mxu0 %v770
    %1682 = vmatprep.subr.bf16.mxu0 %v775
    %1683 = vmatpush1.bf16.msra.mxu0 %v774
    %1684 = vmatprep.subr.bf16.mxu0 0
    %1685 = vmatpush1.bf16.msra.mxu0 0
    %1686 = vmatprep.subr.bf16.mxu0 0
    %1687 = vmatpush1.bf16.msra.mxu0 0
    %1688 = vmatprep.subr.bf16.mxu0 0
    %1689 = vmatpush1.bf16.msra.mxu0 0
    %1690 = vmatprep.subr.bf16.mxu0 0
    %1691 = vmatpush1.bf16.msra.mxu0 0
    %1692 = vmatprep.subr.bf16.mxu0 0
    %1693 = vmatpush1.bf16.msra.mxu0 0
    %1694 = vmatprep.subr.bf16.mxu0 0
    %1695 = vmatpush1.bf16.msra.mxu0 0
    %1696 = vmatprep.subr.bf16.mxu0 0
    %1697 = vmatpush1.bf16.msra.mxu0 0
    %1698 = vmatprep.subr.bf16.mxu0 0
    %1699 = vmatpush1.bf16.msra.mxu0 0
    %1700 = vmatprep.mubr.bf16.mxu0 0
    %1701 = vmatmul.mubr.bf16.gmra.mrb[0].mxu0 %v1667
    %v1702 = vpop.f32.mrb[0].mxu0
    %v1703 = vadd.f32 0.0, %v1702
    %v1704 = vpop.f32.mrb[0].mxu0
    %v1705 = vadd.f32 0.0, %v1704
    %v1706 = vpop.f32.mrb[0].mxu0
    %v1707 = vadd.f32 0.0, %v1706
    %v1708 = vpop.f32.mrb[0].mxu0
    %v1709 = vadd.f32 0.0, %v1708
    %1710 = vdwg.mxu0
    %1711 = vmatprep.subr.bf16.mxu0 %v749
    %1712 = vmatpush1.bf16.msra.mxu0 %v748
    %1713 = vmatprep.subr.bf16.mxu0 %v753
    %1714 = vmatpush1.bf16.msra.mxu0 %v752
    %1715 = vmatprep.subr.bf16.mxu0 %v757
    %1716 = vmatpush1.bf16.msra.mxu0 %v756
    %1717 = vmatprep.subr.bf16.mxu0 %v761
    %1718 = vmatpush1.bf16.msra.mxu0 %v760
    %1719 = vmatprep.subr.bf16.mxu0 %v765
    %1720 = vmatpush1.bf16.msra.mxu0 %v764
    %1721 = vmatprep.subr.bf16.mxu0 %v769
    %1722 = vmatpush1.bf16.msra.mxu0 %v768
    %1723 = vmatprep.subr.bf16.mxu0 %v773
    %1724 = vmatpush1.bf16.msra.mxu0 %v772
    %1725 = vmatprep.subr.bf16.mxu0 %v777
    %1726 = vmatpush1.bf16.msra.mxu0 %v776
    %1727 = vmatprep.subr.bf16.mxu0 0
    %1728 = vmatpush1.bf16.msra.mxu0 0
    %1729 = vmatprep.subr.bf16.mxu0 0
    %1730 = vmatpush1.bf16.msra.mxu0 0
    %1731 = vmatprep.subr.bf16.mxu0 0
    %1732 = vmatpush1.bf16.msra.mxu0 0
    %1733 = vmatprep.subr.bf16.mxu0 0
    %1734 = vmatpush1.bf16.msra.mxu0 0
    %1735 = vmatprep.subr.bf16.mxu0 0
    %1736 = vmatpush1.bf16.msra.mxu0 0
    %1737 = vmatprep.subr.bf16.mxu0 0
    %1738 = vmatpush1.bf16.msra.mxu0 0
    %1739 = vmatprep.subr.bf16.mxu0 0
    %1740 = vmatpush1.bf16.msra.mxu0 0
    %1741 = vmatprep.subr.bf16.mxu0 0
    %1742 = vmatpush1.bf16.msra.mxu0 0
    %1743 = vmatprep.mubr.bf16.mxu0 0
    %1744 = vmatmul.mubr.bf16.gmra.mrb[0].mxu0 %v1667
    %v1745 = vpop.f32.mrb[0].mxu0
    %v1746 = vadd.f32 0.0, %v1745
    %v1747 = vpop.f32.mrb[0].mxu0
    %v1748 = vadd.f32 0.0, %v1747
    %v1749 = vpop.f32.mrb[0].mxu0
    %v1750 = vadd.f32 0.0, %v1749
    %v1751 = vpop.f32.mrb[0].mxu0
    %v1752 = vadd.f32 0.0, %v1751
    %1753 = vdwg.mxu0
    %v1754 = vadd.f32 %v330, %v1703
    %v1755 = vadd.f32 %v332, %v1705
    %v1756 = vadd.f32 %v443, %v1746
    %v1757 = vadd.f32 %v445, %v1748
    %v1758 = vadd.f32 %v334, %v1707
    %v1759 = vadd.f32 %v336, %v1709
    %v1760 = vadd.f32 %v447, %v1750
    %v1761 = vadd.f32 %v449, %v1752
    %v1762 = vxor.u32 %v1754, 2147483648
    %v1763 = vxor.u32 %v1758, 2147483648
    %v1764 = vmul.f32 %v1762, 1.442695
    %v1765 = vpow.pop %v1764
    %v1766 = vmul.f32 %v1763, 1.442695
    %v1767 = vpow.pop %v1766
    %v1768 = vadd.f32 %v1765, 1.0
    %v1769 = vadd.f32 %v1767, 1.0
    %v1770 = vrcp.pop %v1768
    %v1771 = vmul.f32 1.0, %v1770
    %v1772 = vrcp.pop %v1769
    %v1773 = vmul.f32 1.0, %v1772
    %v1774 = vxor.u32 %v1755, 2147483648
    %v1775 = vxor.u32 %v1759, 2147483648
    %v1776 = vmul.f32 %v1774, 1.442695
    %v1777 = vpow.pop %v1776
    %v1778 = vmul.f32 %v1775, 1.442695
    %v1779 = vpow.pop %v1778
    %v1780 = vadd.f32 %v1777, 1.0
    %v1781 = vadd.f32 %v1779, 1.0
    %v1782 = vrcp.pop %v1780
    %v1783 = vmul.f32 1.0, %v1782
    %v1784 = vrcp.pop %v1781
    %v1785 = vmul.f32 1.0, %v1784
    %v1786 = vtanh.pop %v1756
    %v1787 = vtanh.pop %v1760
    %v1788 = vxor.u32 %v1757, 2147483648
    %v1789 = vxor.u32 %v1761, 2147483648
    %v1790 = vmul.f32 %v1788, 1.442695
    %v1791 = vpow.pop %v1790
    %v1792 = vmul.f32 %v1789, 1.442695
    %v1793 = vpow.pop %v1792
    %v1794 = vadd.f32 %v1791, 1.0
    %v1795 = vadd.f32 %v1793, 1.0
    %v1796 = vrcp.pop %v1794
    %v1797 = vmul.f32 1.0, %v1796
    %v1798 = vrcp.pop %v1795
    %v1799 = vmul.f32 1.0, %v1798
    %v1800 = vmul.f32 %v1783, %v1661
    %v1801 = vmul.f32 %v1785, %v1662
    %v1802 = vmul.f32 %v1771, %v1786
    %v1803 = vmul.f32 %v1773, %v1787
    %v1804 = vadd.f32 %v1800, %v1802
    %v1805 = vadd.f32 %v1801, %v1803
    %v1806 = vtanh.pop %v1804
    %v1807 = vtanh.pop %v1805
    %v1808 = vmul.f32 %v1797, %v1806
    %v1809 = vmul.f32 %v1799, %v1807
    %v1810 = vpack.c.bf16 %v1809, %v1808
    %1811 = vmatprep.subr.bf16.mxu0 %v747
    %1812 = vmatpush1.bf16.msra.mxu0 %v746
    %1813 = vmatprep.subr.bf16.mxu0 %v751
    %1814 = vmatpush1.bf16.msra.mxu0 %v750
    %1815 = vmatprep.subr.bf16.mxu0 %v755
    %1816 = vmatpush1.bf16.msra.mxu0 %v754
    %1817 = vmatprep.subr.bf16.mxu0 %v759
    %1818 = vmatpush1.bf16.msra.mxu0 %v758
    %1819 = vmatprep.subr.bf16.mxu0 %v763
    %1820 = vmatpush1.bf16.msra.mxu0 %v762
    %1821 = vmatprep.subr.bf16.mxu0 %v767
    %1822 = vmatpush1.bf16.msra.mxu0 %v766
    %1823 = vmatprep.subr.bf16.mxu0 %v771
    %1824 = vmatpush1.bf16.msra.mxu0 %v770
    %1825 = vmatprep.subr.bf16.mxu0 %v775
    %1826 = vmatpush1.bf16.msra.mxu0 %v774
    %1827 = vmatprep.subr.bf16.mxu0 0
    %1828 = vmatpush1.bf16.msra.mxu0 0
    %1829 = vmatprep.subr.bf16.mxu0 0
    %1830 = vmatpush1.bf16.msra.mxu0 0
    %1831 = vmatprep.subr.bf16.mxu0 0
    %1832 = vmatpush1.bf16.msra.mxu0 0
    %1833 = vmatprep.subr.bf16.mxu0 0
    %1834 = vmatpush1.bf16.msra.mxu0 0
    %1835 = vmatprep.subr.bf16.mxu0 0
    %1836 = vmatpush1.bf16.msra.mxu0 0
    %1837 = vmatprep.subr.bf16.mxu0 0
    %1838 = vmatpush1.bf16.msra.mxu0 0
    %1839 = vmatprep.subr.bf16.mxu0 0
    %1840 = vmatpush1.bf16.msra.mxu0 0
    %1841 = vmatprep.subr.bf16.mxu0 0
    %1842 = vmatpush1.bf16.msra.mxu0 0
    %1843 = vmatprep.mubr.bf16.mxu0 0
    %1844 = vmatmul.mubr.bf16.gmra.mrb[0].mxu0 %v1810
    %v1845 = vpop.f32.mrb[0].mxu0
    %v1846 = vadd.f32 0.0, %v1845
    %v1847 = vpop.f32.mrb[0].mxu0
    %v1848 = vadd.f32 0.0, %v1847
    %v1849 = vpop.f32.mrb[0].mxu0
    %v1850 = vadd.f32 0.0, %v1849
    %v1851 = vpop.f32.mrb[0].mxu0
    %v1852 = vadd.f32 0.0, %v1851
    %1853 = vdwg.mxu0
    %1854 = vmatprep.subr.bf16.mxu0 %v749
    %1855 = vmatpush1.bf16.msra.mxu0 %v748
    %1856 = vmatprep.subr.bf16.mxu0 %v753
    %1857 = vmatpush1.bf16.msra.mxu0 %v752
    %1858 = vmatprep.subr.bf16.mxu0 %v757
    %1859 = vmatpush1.bf16.msra.mxu0 %v756
    %1860 = vmatprep.subr.bf16.mxu0 %v761
    %1861 = vmatpush1.bf16.msra.mxu0 %v760
    %1862 = vmatprep.subr.bf16.mxu0 %v765
    %1863 = vmatpush1.bf16.msra.mxu0 %v764
    %1864 = vmatprep.subr.bf16.mxu0 %v769
    %1865 = vmatpush1.bf16.msra.mxu0 %v768
    %1866 = vmatprep.subr.bf16.mxu0 %v773
    %1867 = vmatpush1.bf16.msra.mxu0 %v772
    %1868 = vmatprep.subr.bf16.mxu0 %v777
    %1869 = vmatpush1.bf16.msra.mxu0 %v776
    %1870 = vmatprep.subr.bf16.mxu0 0
    %1871 = vmatpush1.bf16.msra.mxu0 0
    %1872 = vmatprep.subr.bf16.mxu0 0
    %1873 = vmatpush1.bf16.msra.mxu0 0
    %1874 = vmatprep.subr.bf16.mxu0 0
    %1875 = vmatpush1.bf16.msra.mxu0 0
    %1876 = vmatprep.subr.bf16.mxu0 0
    %1877 = vmatpush1.bf16.msra.mxu0 0
    %1878 = vmatprep.subr.bf16.mxu0 0
    %1879 = vmatpush1.bf16.msra.mxu0 0
    %1880 = vmatprep.subr.bf16.mxu0 0
    %1881 = vmatpush1.bf16.msra.mxu0 0
    %1882 = vmatprep.subr.bf16.mxu0 0
    %1883 = vmatpush1.bf16.msra.mxu0 0
    %1884 = vmatprep.subr.bf16.mxu0 0
    %1885 = vmatpush1.bf16.msra.mxu0 0
    %1886 = vmatprep.mubr.bf16.mxu0 0
    %1887 = vmatmul.mubr.bf16.gmra.mrb[0].mxu0 %v1810
    %v1888 = vpop.f32.mrb[0].mxu0
    %v1889 = vadd.f32 0.0, %v1888
    %v1890 = vpop.f32.mrb[0].mxu0
    %v1891 = vadd.f32 0.0, %v1890
    %v1892 = vpop.f32.mrb[0].mxu0
    %v1893 = vadd.f32 0.0, %v1892
    %v1894 = vpop.f32.mrb[0].mxu0
    %v1895 = vadd.f32 0.0, %v1894
    %1896 = vdwg.mxu0
    %v1897 = vadd.f32 %v340, %v1846
    %v1898 = vadd.f32 %v342, %v1848
    %v1899 = vadd.f32 %v453, %v1889
    %v1900 = vadd.f32 %v455, %v1891
    %v1901 = vadd.f32 %v344, %v1850
    %v1902 = vadd.f32 %v346, %v1852
    %v1903 = vadd.f32 %v457, %v1893
    %v1904 = vadd.f32 %v459, %v1895
    %v1905 = vxor.u32 %v1897, 2147483648
    %v1906 = vxor.u32 %v1901, 2147483648
    %v1907 = vmul.f32 %v1905, 1.442695
    %v1908 = vpow.pop %v1907
    %v1909 = vmul.f32 %v1906, 1.442695
    %v1910 = vpow.pop %v1909
    %v1911 = vadd.f32 %v1908, 1.0
    %v1912 = vadd.f32 %v1910, 1.0
    %v1913 = vrcp.pop %v1911
    %v1914 = vmul.f32 1.0, %v1913
    %v1915 = vrcp.pop %v1912
    %v1916 = vmul.f32 1.0, %v1915
    %v1917 = vxor.u32 %v1898, 2147483648
    %v1918 = vxor.u32 %v1902, 2147483648
    %v1919 = vmul.f32 %v1917, 1.442695
    %v1920 = vpow.pop %v1919
    %v1921 = vmul.f32 %v1918, 1.442695
    %v1922 = vpow.pop %v1921
    %v1923 = vadd.f32 %v1920, 1.0
    %v1924 = vadd.f32 %v1922, 1.0
    %v1925 = vrcp.pop %v1923
    %v1926 = vmul.f32 1.0, %v1925
    %v1927 = vrcp.pop %v1924
    %v1928 = vmul.f32 1.0, %v1927
    %v1929 = vtanh.pop %v1899
    %v1930 = vtanh.pop %v1903
    %v1931 = vxor.u32 %v1900, 2147483648
    %v1932 = vxor.u32 %v1904, 2147483648
    %v1933 = vmul.f32 %v1931, 1.442695
    %v1934 = vpow.pop %v1933
    %v1935 = vmul.f32 %v1932, 1.442695
    %v1936 = vpow.pop %v1935
    %v1937 = vadd.f32 %v1934, 1.0
    %v1938 = vadd.f32 %v1936, 1.0
    %v1939 = vrcp.pop %v1937
    %v1940 = vmul.f32 1.0, %v1939
    %v1941 = vrcp.pop %v1938
    %v1942 = vmul.f32 1.0, %v1941
    %v1943 = vmul.f32 %v1926, %v1804
    %v1944 = vmul.f32 %v1928, %v1805
    %v1945 = vmul.f32 %v1914, %v1929
    %v1946 = vmul.f32 %v1916, %v1930
    %v1947 = vadd.f32 %v1943, %v1945
    %v1948 = vadd.f32 %v1944, %v1946
    %v1949 = vtanh.pop %v1947
    %v1950 = vtanh.pop %v1948
    %v1951 = vmul.f32 %v1940, %v1949
    %v1952 = vmul.f32 %v1942, %v1950
    %v1953 = vpack.c.bf16 %v1952, %v1951
    %v1954 = vld [vmem:[%s6] sm:$0xf]
    %v1955 = vld [vmem:[%s6 + $0x4] sm:$0xf]
    %v1956 = vld [vmem:[%s6 + $0x8] sm:$0xf]
    %v1957 = vld [vmem:[%s6 + $0xc] sm:$0xf]
    %v1958 = vld [vmem:[%s6 + $0x10] sm:$0xf]
    %v1959 = vld [vmem:[%s6 + $0x14] sm:$0xf]
    %v1960 = vld [vmem:[%s6 + $0x18] sm:$0xf]
    %v1961 = vld [vmem:[%s6 + $0x1c] sm:$0xf]
    %v1962 = vld [vmem:[%s6 + $0x20] sm:$0xf]
    %v1963 = vld [vmem:[%s6 + $0x24] sm:$0xf]
    %v1964 = vld [vmem:[%s6 + $0x28] sm:$0xf]
    %v1965 = vld [vmem:[%s6 + $0x2c] sm:$0xf]
    %v1966 = vld [vmem:[%s6 + $0x30] sm:$0xf]
    %v1967 = vld [vmem:[%s6 + $0x34] sm:$0xf]
    %v1968 = vld [vmem:[%s6 + $0x38] sm:$0xf]
    %v1969 = vld [vmem:[%s6 + $0x3c] sm:$0xf]
    %v1970 = vpack.c.bf16 %v617, %v616
    %v1971 = vld [vmem:[#allocation8] sm:$0xf]
    %v1972 = vld [vmem:[#allocation8 + $0x4] sm:$0xf]
    %v1973 = vld [vmem:[#allocation8 + $0x8] sm:$0xf]
    %v1974 = vld [vmem:[#allocation8 + $0xc] sm:$0xf]
    %v1975 = vld [vmem:[#allocation8 + $0x10] sm:$0xf]
    %v1976 = vld [vmem:[#allocation8 + $0x14] sm:$0xf]
    %v1977 = vld [vmem:[#allocation8 + $0x18] sm:$0xf]
    %v1978 = vld [vmem:[#allocation8 + $0x1c] sm:$0xf]
    %v1979 = vld [vmem:[#allocation8 + $0x20] sm:$0xf]
    %v1980 = vld [vmem:[#allocation8 + $0x24] sm:$0xf]
    %v1981 = vld [vmem:[#allocation8 + $0x28] sm:$0xf]
    %v1982 = vld [vmem:[#allocation8 + $0x2c] sm:$0xf]
    %v1983 = vld [vmem:[#allocation8 + $0x30] sm:$0xf]
    %v1984 = vld [vmem:[#allocation8 + $0x34] sm:$0xf]
    %v1985 = vld [vmem:[#allocation8 + $0x38] sm:$0xf]
    %v1986 = vld [vmem:[#allocation8 + $0x3c] sm:$0xf]
    %v2003 = vunpack.c.l.b16 %v1971
    %v2004 = vunpack.c.l.b16 %v1972
    %v2005 = vunpack.c.l.b16 %v1973
    %v2006 = vunpack.c.l.b16 %v1974
    %v2007 = vunpack.c.l.b16 %v1975
    %v2008 = vunpack.c.l.b16 %v1976
    %v2009 = vunpack.c.l.b16 %v1977
    %v2010 = vunpack.c.l.b16 %v1978
    %v2011 = vunpack.c.l.b16 %v1979
    %v2012 = vunpack.c.l.b16 %v1980
    %v2013 = vunpack.c.l.b16 %v1981
    %v2014 = vunpack.c.l.b16 %v1982
    %v2015 = vunpack.c.l.b16 %v1983
    %v2016 = vunpack.c.l.b16 %v1984
    %v2017 = vunpack.c.l.b16 %v1985
    %v2018 = vunpack.c.l.b16 %v1986
    %v2019 = vpack.c.b16 %v2004, %v2003
    %v2020 = vpack.c.b16 %v2006, %v2005
    %v2021 = vpack.c.b16 %v2008, %v2007
    %v2022 = vpack.c.b16 %v2010, %v2009
    %v2023 = vpack.c.b16 %v2012, %v2011
    %v2024 = vpack.c.b16 %v2014, %v2013
    %v2025 = vpack.c.b16 %v2016, %v2015
    %v2026 = vpack.c.b16 %v2018, %v2017
    %2035 = vmatprep.subr.bf16.mxu0 0
    %2036 = vmatpush1.bf16.msra.mxu0 %v2019
    %2037 = vmatprep.subr.bf16.mxu0 0
    %2038 = vmatpush1.bf16.msra.mxu0 %v2020
    %2039 = vmatprep.subr.bf16.mxu0 0
    %2040 = vmatpush1.bf16.msra.mxu0 %v2021
    %2041 = vmatprep.subr.bf16.mxu0 0
    %2042 = vmatpush1.bf16.msra.mxu0 %v2022
    %2043 = vmatprep.subr.bf16.mxu0 0
    %2044 = vmatpush1.bf16.msra.mxu0 %v2023
    %2045 = vmatprep.subr.bf16.mxu0 0
    %2046 = vmatpush1.bf16.msra.mxu0 %v2024
    %2047 = vmatprep.subr.bf16.mxu0 0
    %2048 = vmatpush1.bf16.msra.mxu0 %v2025
    %2049 = vmatprep.subr.bf16.mxu0 0
    %2050 = vmatpush1.bf16.msra.mxu0 %v2026
    %2051 = vmatprep.subr.bf16.mxu0 0
    %2052 = vmatpush1.bf16.msra.mxu0 0
    %2053 = vmatprep.subr.bf16.mxu0 0
    %2054 = vmatpush1.bf16.msra.mxu0 0
    %2055 = vmatprep.subr.bf16.mxu0 0
    %2056 = vmatpush1.bf16.msra.mxu0 0
    %2057 = vmatprep.subr.bf16.mxu0 0
    %2058 = vmatpush1.bf16.msra.mxu0 0
    %2059 = vmatprep.subr.bf16.mxu0 0
    %2060 = vmatpush1.bf16.msra.mxu0 0
    %2061 = vmatprep.subr.bf16.mxu0 0
    %2062 = vmatpush1.bf16.msra.mxu0 0
    %2063 = vmatprep.subr.bf16.mxu0 0
    %2064 = vmatpush1.bf16.msra.mxu0 0
    %2065 = vmatprep.subr.bf16.mxu0 0
    %2066 = vmatpush1.bf16.msra.mxu0 0
    %2067 = vmatprep.mubr.bf16.mxu0 0
    %2068 = vmatmul.mubr.bf16.gmra.mrb[0].mxu0 %v1970
    %v2069 = vpop.f32.mrb[0].mxu0
    %v2070 = vadd.f32 0.0, %v2069
    %v2071 = vpop.f32.mrb[0].mxu0
    %v2072 = vpop.f32.mrb[0].mxu0
    %v2073 = vadd.f32 0.0, %v2072
    %v2074 = vpop.f32.mrb[0].mxu0
    %2075 = vdwg.mxu0
    %v2092 = vunpack.c.l.b16 %v1954
    %v2093 = vunpack.c.l.b16 %v1955
    %v2094 = vunpack.c.l.b16 %v1956
    %v2095 = vunpack.c.l.b16 %v1957
    %v2096 = vunpack.c.l.b16 %v1958
    %v2097 = vunpack.c.l.b16 %v1959
    %v2098 = vunpack.c.l.b16 %v1960
    %v2099 = vunpack.c.l.b16 %v1961
    %v2100 = vunpack.c.l.b16 %v1962
    %v2101 = vunpack.c.l.b16 %v1963
    %v2102 = vunpack.c.l.b16 %v1964
    %v2103 = vunpack.c.l.b16 %v1965
    %v2104 = vunpack.c.l.b16 %v1966
    %v2105 = vunpack.c.l.b16 %v1967
    %v2106 = vunpack.c.l.b16 %v1968
    %v2107 = vunpack.c.l.b16 %v1969
    %v2108 = vpack.c.b16 %v2093, %v2092
    %v2109 = vpack.c.b16 %v2095, %v2094
    %v2110 = vpack.c.b16 %v2097, %v2096
    %v2111 = vpack.c.b16 %v2099, %v2098
    %v2112 = vpack.c.b16 %v2101, %v2100
    %v2113 = vpack.c.b16 %v2103, %v2102
    %v2114 = vpack.c.b16 %v2105, %v2104
    %v2115 = vpack.c.b16 %v2107, %v2106
    %2124 = vmatprep.subr.bf16.mxu0 0
    %2125 = vmatpush1.bf16.msra.mxu0 %v2108
    %2126 = vmatprep.subr.bf16.mxu0 0
    %2127 = vmatpush1.bf16.msra.mxu0 %v2109
    %2128 = vmatprep.subr.bf16.mxu0 0
    %2129 = vmatpush1.bf16.msra.mxu0 %v2110
    %2130 = vmatprep.subr.bf16.mxu0 0
    %2131 = vmatpush1.bf16.msra.mxu0 %v2111
    %2132 = vmatprep.subr.bf16.mxu0 0
    %2133 = vmatpush1.bf16.msra.mxu0 %v2112
    %2134 = vmatprep.subr.bf16.mxu0 0
    %2135 = vmatpush1.bf16.msra.mxu0 %v2113
    %2136 = vmatprep.subr.bf16.mxu0 0
    %2137 = vmatpush1.bf16.msra.mxu0 %v2114
    %2138 = vmatprep.subr.bf16.mxu0 0
    %2139 = vmatpush1.bf16.msra.mxu0 %v2115
    %2140 = vmatprep.subr.bf16.mxu0 0
    %2141 = vmatpush1.bf16.msra.mxu0 0
    %2142 = vmatprep.subr.bf16.mxu0 0
    %2143 = vmatpush1.bf16.msra.mxu0 0
    %2144 = vmatprep.subr.bf16.mxu0 0
    %2145 = vmatpush1.bf16.msra.mxu0 0
    %2146 = vmatprep.subr.bf16.mxu0 0
    %2147 = vmatpush1.bf16.msra.mxu0 0
    %2148 = vmatprep.subr.bf16.mxu0 0
    %2149 = vmatpush1.bf16.msra.mxu0 0
    %2150 = vmatprep.subr.bf16.mxu0 0
    %2151 = vmatpush1.bf16.msra.mxu0 0
    %2152 = vmatprep.subr.bf16.mxu0 0
    %2153 = vmatpush1.bf16.msra.mxu0 0
    %2154 = vmatprep.subr.bf16.mxu0 0
    %2155 = vmatpush1.bf16.msra.mxu0 0
    %2156 = vmatprep.mubr.bf16.mxu0 0
    %2157 = vmatmul.mubr.bf16.gmra.mrb[0].mxu0 %v1953
    %v2158 = vpop.f32.mrb[0].mxu0
    %v2159 = vadd.f32 %v2070, %v2158
    %v2160 = vpop.f32.mrb[0].mxu0
    %v2161 = vpop.f32.mrb[0].mxu0
    %v2162 = vadd.f32 %v2073, %v2161
    %v2163 = vpop.f32.mrb[0].mxu0
    %2164 = vdwg.mxu0
    %v2165 = vld [vmem:[%s8] sm:$0x1]
    %v2167 = vlaneseq
    %v2168 = vshrl.u32 %v2167, 7
    %v2169 = vsub.s32 0, %v2168
    %v2170 = vrot.slane %v2165, %v2169
    %v2172 = vadd.f32 %v2159, %v2170
    %v2173 = vadd.f32 %v2162, %v2170
    %v2174 = vmax.f32 %v2172, 0.0
    %v2175 = vmax.f32 %v2173, 0.0
    %v2176 = vpack.c.bf16 %v2175, %v2174
    %v2177 = vld [vmem:[#allocation10] sm:$0xf]
    %v2178 = vld [vmem:[#allocation10 + $0x4] sm:$0xf]
    %v2179 = vld [vmem:[#allocation10 + $0x8] sm:$0xf]
    %v2180 = vld [vmem:[#allocation10 + $0xc] sm:$0xf]
    %v2181 = vld [vmem:[#allocation10 + $0x10] sm:$0xf]
    %v2182 = vld [vmem:[#allocation10 + $0x14] sm:$0xf]
    %v2183 = vld [vmem:[#allocation10 + $0x18] sm:$0xf]
    %v2184 = vld [vmem:[#allocation10 + $0x1c] sm:$0xf]
    %v2185 = vld [vmem:[#allocation10 + $0x20] sm:$0xf]
    %v2186 = vld [vmem:[#allocation10 + $0x24] sm:$0xf]
    %v2187 = vld [vmem:[#allocation10 + $0x28] sm:$0xf]
    %v2188 = vld [vmem:[#allocation10 + $0x2c] sm:$0xf]
    %v2189 = vld [vmem:[#allocation10 + $0x30] sm:$0xf]
    %v2190 = vld [vmem:[#allocation10 + $0x34] sm:$0xf]
    %v2191 = vld [vmem:[#allocation10 + $0x38] sm:$0xf]
    %v2192 = vld [vmem:[#allocation10 + $0x3c] sm:$0xf]
    %v2193 = vld [vmem:[%s10] sm:$0x1]
    %v2195 = vlaneseq
    %v2196 = vshrl.u32 %v2195, 7
    %v2197 = vsub.s32 0, %v2196
    %v2198 = vrot.slane %v2193, %v2197
    %v2216 = vunpack.c.l.b16 %v2177
    %v2217 = vunpack.c.l.b16 %v2178
    %v2218 = vunpack.c.l.b16 %v2179
    %v2219 = vunpack.c.l.b16 %v2180
    %v2220 = vunpack.c.l.b16 %v2181
    %v2221 = vunpack.c.l.b16 %v2182
    %v2222 = vunpack.c.l.b16 %v2183
    %v2223 = vunpack.c.l.b16 %v2184
    %v2224 = vunpack.c.l.b16 %v2185
    %v2225 = vunpack.c.l.b16 %v2186
    %v2226 = vunpack.c.l.b16 %v2187
    %v2227 = vunpack.c.l.b16 %v2188
    %v2228 = vunpack.c.l.b16 %v2189
    %v2229 = vunpack.c.l.b16 %v2190
    %v2230 = vunpack.c.l.b16 %v2191
    %v2231 = vunpack.c.l.b16 %v2192
    %v2232 = vpack.c.b16 %v2217, %v2216
    %v2233 = vpack.c.b16 %v2219, %v2218
    %v2234 = vpack.c.b16 %v2221, %v2220
    %v2235 = vpack.c.b16 %v2223, %v2222
    %v2236 = vpack.c.b16 %v2225, %v2224
    %v2237 = vpack.c.b16 %v2227, %v2226
    %v2238 = vpack.c.b16 %v2229, %v2228
    %v2239 = vpack.c.b16 %v2231, %v2230
    %2248 = vmatprep.subr.bf16.mxu0 0
    %2249 = vmatpush1.bf16.msra.mxu0 %v2232
    %2250 = vmatprep.subr.bf16.mxu0 0
    %2251 = vmatpush1.bf16.msra.mxu0 %v2233
    %2252 = vmatprep.subr.bf16.mxu0 0
    %2253 = vmatpush1.bf16.msra.mxu0 %v2234
    %2254 = vmatprep.subr.bf16.mxu0 0
    %2255 = vmatpush1.bf16.msra.mxu0 %v2235
    %2256 = vmatprep.subr.bf16.mxu0 0
    %2257 = vmatpush1.bf16.msra.mxu0 %v2236
    %2258 = vmatprep.subr.bf16.mxu0 0
    %2259 = vmatpush1.bf16.msra.mxu0 %v2237
    %2260 = vmatprep.subr.bf16.mxu0 0
    %2261 = vmatpush1.bf16.msra.mxu0 %v2238
    %2262 = vmatprep.subr.bf16.mxu0 0
    %2263 = vmatpush1.bf16.msra.mxu0 %v2239
    %2264 = vmatprep.subr.bf16.mxu0 0
    %2265 = vmatpush1.bf16.msra.mxu0 0
    %2266 = vmatprep.subr.bf16.mxu0 0
    %2267 = vmatpush1.bf16.msra.mxu0 0
    %2268 = vmatprep.subr.bf16.mxu0 0
    %2269 = vmatpush1.bf16.msra.mxu0 0
    %2270 = vmatprep.subr.bf16.mxu0 0
    %2271 = vmatpush1.bf16.msra.mxu0 0
    %2272 = vmatprep.subr.bf16.mxu0 0
    %2273 = vmatpush1.bf16.msra.mxu0 0
    %2274 = vmatprep.subr.bf16.mxu0 0
    %2275 = vmatpush1.bf16.msra.mxu0 0
    %2276 = vmatprep.subr.bf16.mxu0 0
    %2277 = vmatpush1.bf16.msra.mxu0 0
    %2278 = vmatprep.subr.bf16.mxu0 0
    %2279 = vmatpush1.bf16.msra.mxu0 0
    %2280 = vmatprep.mubr.bf16.mxu0 0
    %2281 = vmatmul.mubr.bf16.gmra.mrb[0].mxu0 %v2176
    %v2282 = vpop.f32.mrb[0].mxu0
    %v2283 = vadd.f32 %v2198, %v2282
    %v2284 = vpop.f32.mrb[0].mxu0
    %v2285 = vpop.f32.mrb[0].mxu0
    %v2286 = vadd.f32 %v2198, %v2285
    %v2287 = vpop.f32.mrb[0].mxu0
    %2288 = vdwg.mxu0
    %v2289 = vxor.u32 %v2283, 2147483648
    %v2290 = vxor.u32 %v2286, 2147483648
    %v2291 = vmul.f32 %v2289, 1.442695
    %v2292 = vpow.pop %v2291
    %v2293 = vmul.f32 %v2290, 1.442695
    %v2294 = vpow.pop %v2293
    %v2295 = vadd.f32 %v2292, 1.0
    %v2296 = vadd.f32 %v2294, 1.0
    %v2297 = vrcp.pop %v2295
    %v2298 = vmul.f32 1.0, %v2297
    %v2299 = vrcp.pop %v2296
    %v2300 = vmul.f32 1.0, %v2299
    %2301 = vst [vmem:[#allocation11] sm:$0xff] %v2298
    %2302 = vst [vmem:[#allocation11 + $0x8] sm:$0xff] %v2300
    // Predicated region
    $region66: #{tpu_custom_call.1} parent=1 // pred_check
      _
    $region67: #{tpu_custom_call.1} parent=1 // pred_check_branch
      %2304 = sbr.rel (0) target = $region69
    $region68: #{tpu_custom_call.1} parent=1 // pred_region
      %s2306 = ssub.s32 256, 256
      %2307 = vsyncadd [#allocation4], %s2306
      %s2308 = sshll.u32 [#allocation11], 4
      %s2309 = int_to_ptr.vmem [resolvable:$true] %s2308
      %2314 = dma.vmem_to_hbm [thread:$0]  %s2309, 256, %s11, [#allocation4], 128, 128, 8
    $region69: #{tpu_custom_call.1} parent=1 // pred_fallthru
      _
    // Predicated region
    $region70: #{tpu_custom_call.1} parent=1 // pred_check
      _
    $region71: #{tpu_custom_call.1} parent=1 // pred_check_branch
      %2316 = sbr.rel (0) target = $region73
    $region72: #{tpu_custom_call.1} parent=1 // pred_region
      %2317 = dma.done [#allocation4], 256
    $region73: #{tpu_custom_call.1} parent=1 // pred_fallthru
      _
    %2318 = vsyncpa [#allocation3], 1
    %2319 = vsyncpa [#allocation6], 1
    %2320 = vsyncpa [#allocation9], 1
    %2321 = vsyncpa [#allocation4], 1

</llo_original>
